<compile_context>
chip_gen: v7x
topology: tpu7x:2x2x1
jax: 0.10.0
libtpu: 0.0.40
codegen_flags: <defaults>
</compile_context>

<pallas_src>
import functools

import jax
import jax.numpy as jnp
from jax.experimental import pallas as pl
from jax.experimental.pallas import tpu as pltpu

_VMEM_LIMIT = 48 * 1024 * 1024  # headroom below v7x's 64 MiB physical VMEM


def _pick_tile(dim, target, align):
    """Largest multiple of `align` <= target that evenly divides dim, else full dim."""
    if dim <= target:
        return dim
    t = (target // align) * align
    while t >= align:
        if dim % t == 0:
            return t
        t -= align
    return dim


# ----------------------------------------------------------------------------
# Tiled matmul + bias  (bf16 MXU inputs, f32 accumulation)
# ----------------------------------------------------------------------------
def _matmul_bias_kernel(x_ref, w_ref, b_ref, o_ref, acc_ref):
    @pl.when(pl.program_id(2) == 0)
    def _():
        acc_ref[...] = jnp.zeros_like(acc_ref)

    acc_ref[...] += jnp.dot(x_ref[...], w_ref[...],
                            preferred_element_type=jnp.float32)

    @pl.when(pl.program_id(2) == pl.num_programs(2) - 1)
    def _():
        o_ref[...] = (acc_ref[...] + b_ref[...].astype(jnp.float32)).astype(o_ref.dtype)


def linear(x2d, w, b, *, tile_m=256, tile_n=512, tile_k=512):
    """x2d: (M, K) bf16, w: (K, N) bf16, b: (N,) f32 -> (M, N) bf16."""
    M, K = x2d.shape
    N = w.shape[1]
    tm = _pick_tile(M, tile_m, 8)
    tn = _pick_tile(N, tile_n, 128)
    tk = _pick_tile(K, tile_k, 128)
    grid = (M // tm, N // tn, K // tk)
    return pl.pallas_call(
        _matmul_bias_kernel,
        out_shape=jax.ShapeDtypeStruct((M, N), x2d.dtype),
        grid=grid,
        in_specs=[
            pl.BlockSpec((tm, tk), lambda i, j, k: (i, k)),
            pl.BlockSpec((tk, tn), lambda i, j, k: (k, j)),
            pl.BlockSpec((1, tn), lambda i, j, k: (0, j)),
        ],
        out_specs=pl.BlockSpec((tm, tn), lambda i, j, k: (i, j)),
        scratch_shapes=[pltpu.VMEM((tm, tn), jnp.float32)],
        compiler_params=pltpu.CompilerParams(
            dimension_semantics=("parallel", "parallel", "arbitrary"),
            vmem_limit_bytes=_VMEM_LIMIT,
        ),
    )(x2d, w, b.reshape(1, N))


# ----------------------------------------------------------------------------
# Fused position-wise FFN: relu(X@W1 + b1) @ W2 + b2, tiled over M
# ----------------------------------------------------------------------------
def _ffn_kernel(x_ref, w1_ref, b1_ref, w2_ref, b2_ref, o_ref):
    h = jnp.dot(x_ref[...], w1_ref[...], preferred_element_type=jnp.float32)
    h = jnp.maximum(h + b1_ref[...].astype(jnp.float32), 0.0)
    out = jnp.dot(h.astype(w2_ref.dtype), w2_ref[...],
                  preferred_element_type=jnp.float32)
    o_ref[...] = (out + b2_ref[...].astype(jnp.float32)).astype(o_ref.dtype)


def ffn(x2d, w1, b1, w2, b2, *, tile_m=256):
    M, D = x2d.shape
    F = w1.shape[1]
    tm = _pick_tile(M, tile_m, 8)
    # TODO(synk): tile the d_ff axis (with accumulation on the 2nd matmul) for very large d_ff.
    return pl.pallas_call(
        _ffn_kernel,
        out_shape=jax.ShapeDtypeStruct((M, D), x2d.dtype),
        grid=(M // tm,),
        in_specs=[
            pl.BlockSpec((tm, D), lambda i: (i, 0)),
            pl.BlockSpec((D, F), lambda i: (0, 0)),   # resident across M steps
            pl.BlockSpec((1, F), lambda i: (0, 0)),
            pl.BlockSpec((F, D), lambda i: (0, 0)),   # resident across M steps
            pl.BlockSpec((1, D), lambda i: (0, 0)),
        ],
        out_specs=pl.BlockSpec((tm, D), lambda i: (i, 0)),
        compiler_params=pltpu.CompilerParams(
            dimension_semantics=("parallel",),
            vmem_limit_bytes=_VMEM_LIMIT,
        ),
    )(x2d, w1, b1.reshape(1, F), w2, b2.reshape(1, D))


# ----------------------------------------------------------------------------
# Fused residual-add + LayerNorm (f32 math), tiled over M
# ----------------------------------------------------------------------------
def _add_ln_kernel(x_ref, y_ref, g_ref, b_ref, o_ref):
    x = x_ref[...].astype(jnp.float32) + y_ref[...].astype(jnp.float32)
    mu = jnp.mean(x, axis=-1, keepdims=True)
    var = jnp.mean(jnp.square(x - mu), axis=-1, keepdims=True)
    xn = (x - mu) * jax.lax.rsqrt(var + 1e-5)
    o_ref[...] = (xn * g_ref[...] + b_ref[...]).astype(o_ref.dtype)


def add_layernorm(x2d, y2d, gamma, beta, *, tile_m=512):
    M, D = x2d.shape
    tm = _pick_tile(M, tile_m, 8)
    return pl.pallas_call(
        _add_ln_kernel,
        out_shape=jax.ShapeDtypeStruct((M, D), x2d.dtype),
        grid=(M // tm,),
        in_specs=[
            pl.BlockSpec((tm, D), lambda i: (i, 0)),
            pl.BlockSpec((tm, D), lambda i: (i, 0)),
            pl.BlockSpec((1, D), lambda i: (0, 0)),
            pl.BlockSpec((1, D), lambda i: (0, 0)),
        ],
        out_specs=pl.BlockSpec((tm, D), lambda i: (i, 0)),
        compiler_params=pltpu.CompilerParams(
            dimension_semantics=("parallel",),
            vmem_limit_bytes=_VMEM_LIMIT,
        ),
    )(x2d, y2d, gamma.reshape(1, D), beta.reshape(1, D))


# ----------------------------------------------------------------------------
# Multi-head attention kernel: all heads of one batch row per grid step,
# broadcast mask, fused output projection W_o + b_o in the epilogue.
# ----------------------------------------------------------------------------
def _mha_kernel(q_ref, k_ref, v_ref, m_ref, wo_ref, bo_ref, o_ref, *,
                num_heads, scale):
    q = q_ref[0]                        # (Tq, D) bf16
    k = k_ref[0]                        # (Tk, D) bf16
    v = v_ref[0]                        # (Tk, D) bf16
    mask = m_ref[0]                     # (Tq, Tk) f32 additive
    D = q.shape[-1]
    dk = D // num_heads

    ctx_heads = []
    for h in range(num_heads):          # static unroll over heads (lane slices)
        lo, hi = h * dk, (h + 1) * dk
        qh = q[:, lo:hi]
        kh = k[:, lo:hi]
        vh = v[:, lo:hi]
        # q @ k^T via dot_general (no explicit transpose), f32 scores
        s = jax.lax.dot_general(qh, kh, (((1,), (1,)), ((), ())),
                                preferred_element_type=jnp.float32)
        s = s * scale + mask
        s = s - jnp.max(s, axis=-1, keepdims=True)
        p = jnp.exp(s)
        p = p * pl.reciprocal(jnp.sum(p, axis=-1, keepdims=True), approx=True)
        ctx_heads.append(jnp.dot(p.astype(vh.dtype), vh,
                                 preferred_element_type=jnp.float32))

    ctx = jnp.concatenate(ctx_heads, axis=-1)          # (Tq, D), lane-dense
    out = jnp.dot(ctx.astype(wo_ref.dtype), wo_ref[...],
                  preferred_element_type=jnp.float32)
    o_ref[0] = (out + bo_ref[...].astype(jnp.float32)).astype(o_ref.dtype)


def multihead_attention_call(q, k, v, mask, wo, bo, num_heads):
    """q: (B, Tq, D), k/v: (B, Tk, D), mask: (1, Tq, Tk) additive f32."""
    B, Tq, D = q.shape
    Tk = k.shape[1]
    dk = D // num_heads
    kern = functools.partial(_mha_kernel, num_heads=num_heads,
                             scale=1.0 / (dk ** 0.5))
    # TODO(synk): for long Tk, tile the Tk axis with an online-softmax (flash) accumulator.
    return pl.pallas_call(
        kern,
        out_shape=jax.ShapeDtypeStruct((B, Tq, D), q.dtype),
        grid=(B,),
        in_specs=[
            pl.BlockSpec((1, Tq, D), lambda b: (b, 0, 0)),
            pl.BlockSpec((1, Tk, D), lambda b: (b, 0, 0)),
            pl.BlockSpec((1, Tk, D), lambda b: (b, 0, 0)),
            pl.BlockSpec((1, Tq, Tk), lambda b: (0, 0, 0)),   # single broadcast tile
            pl.BlockSpec((D, D), lambda b: (0, 0)),           # resident W_o
            pl.BlockSpec((1, D), lambda b: (0, 0)),
        ],
        out_specs=pl.BlockSpec((1, Tq, D), lambda b: (b, 0, 0)),
        compiler_params=pltpu.CompilerParams(
            dimension_semantics=("parallel",),
            vmem_limit_bytes=_VMEM_LIMIT,
        ),
    )(q, k, v, mask, wo, bo.reshape(1, D))


# ----------------------------------------------------------------------------
# Decoder (JAX glue around the Pallas kernels)
# ----------------------------------------------------------------------------
def self_attention(x, mask, p, num_heads):
    B, T, D = x.shape
    qkv = linear(x.reshape(B * T, D), p["wqkv"], p["bqkv"]).reshape(B, T, 3 * D)
    q = qkv[:, :, :D]
    k = qkv[:, :, D:2 * D]
    v = qkv[:, :, 2 * D:]
    return multihead_attention_call(q, k, v, mask, p["wo"], p["bo"], num_heads)


def cross_attention(x, enc, mask, p, num_heads):
    B, Tq, D = x.shape
    Tk = enc.shape[1]
    q = linear(x.reshape(B * Tq, D), p["wq"], p["bq"]).reshape(B, Tq, D)
    kv = linear(enc.reshape(B * Tk, D), p["wkv"], p["bkv"]).reshape(B, Tk, 2 * D)
    k = kv[:, :, :D]
    v = kv[:, :, D:]
    return multihead_attention_call(q, k, v, mask, p["wo"], p["bo"], num_heads)


def decoder_layer(x, enc, src_mask, tgt_mask, p, num_heads):
    B, T, D = x.shape
    # masked self-attention + residual + LN   (dropout == identity, eval mode)
    sa = self_attention(x, tgt_mask, p["self_attn"], num_heads)
    x = add_layernorm(x.reshape(B * T, D), sa.reshape(B * T, D),
                      p["ln1_g"], p["ln1_b"]).reshape(B, T, D)
    # cross-attention + residual + LN
    ca = cross_attention(x, enc, src_mask, p["cross_attn"], num_heads)
    x = add_layernorm(x.reshape(B * T, D), ca.reshape(B * T, D),
                      p["ln2_g"], p["ln2_b"]).reshape(B, T, D)
    # feed-forward + residual + LN
    ff = ffn(x.reshape(B * T, D), p["w1"], p["b1"], p["w2"], p["b2"])
    x = add_layernorm(x.reshape(B * T, D), ff,
                      p["ln3_g"], p["ln3_b"]).reshape(B, T, D)
    return x


def decoder_forward(x, enc, src_mask, tgt_mask, params, num_heads):
    orig_dtype = x.dtype
    x = x.astype(jnp.bfloat16)
    enc = enc.astype(jnp.bfloat16)
    for layer_p in params:
        x = decoder_layer(x, enc, src_mask, tgt_mask, layer_p, num_heads)
    return x.astype(orig_dtype)


# ----------------------------------------------------------------------------
# Deterministic parameter construction (matmul weights bf16, the rest f32)
# ----------------------------------------------------------------------------
def _mk_w(key, shape):
    return (0.02 * jax.random.normal(key, shape, jnp.float32)).astype(jnp.bfloat16)


def _init_self_attn(key, d_model):
    ks = jax.random.split(key, 4)
    wq, wk, wv = (_mk_w(ks[i], (d_model, d_model)) for i in range(3))
    return {
        "wqkv": jnp.concatenate([wq, wk, wv], axis=1),       # (D, 3D) fused
        "bqkv": jnp.zeros((3 * d_model,), jnp.float32),
        "wo": _mk_w(ks[3], (d_model, d_model)),
        "bo": jnp.zeros((d_model,), jnp.float32),
    }


def _init_cross_attn(key, d_model):
    ks = jax.random.split(key, 4)
    wk, wv = _mk_w(ks[1], (d_model, d_model)), _mk_w(ks[2], (d_model, d_model))
    return {
        "wq": _mk_w(ks[0], (d_model, d_model)),
        "bq": jnp.zeros((d_model,), jnp.float32),
        "wkv": jnp.concatenate([wk, wv], axis=1),            # (D, 2D) fused
        "bkv": jnp.zeros((2 * d_model,), jnp.float32),
        "wo": _mk_w(ks[3], (d_model, d_model)),
        "bo": jnp.zeros((d_model,), jnp.float32),
    }


def init_decoder_params(key, d_model, d_ff, num_layers):
    params = []
    for _ in range(num_layers):
        key, k_sa, k_ca, k_w1, k_w2 = jax.random.split(key, 5)
        params.append({
            "self_attn": _init_self_attn(k_sa, d_model),
            "cross_attn": _init_cross_attn(k_ca, d_model),
            "w1": _mk_w(k_w1, (d_model, d_ff)),
            "b1": jnp.zeros((d_ff,), jnp.float32),
            "w2": _mk_w(k_w2, (d_ff, d_model)),
            "b2": jnp.zeros((d_model,), jnp.float32),
            "ln1_g": jnp.ones((d_model,), jnp.float32),
            "ln1_b": jnp.zeros((d_model,), jnp.float32),
            "ln2_g": jnp.ones((d_model,), jnp.float32),
            "ln2_b": jnp.zeros((d_model,), jnp.float32),
            "ln3_g": jnp.ones((d_model,), jnp.float32),
            "ln3_b": jnp.zeros((d_model,), jnp.float32),
        })
    return params


if __name__ == "__main__":
    d_model, d_ff, num_heads, num_layers = 32, 64, 4, 2
    B, T_tgt, T_src = 2, 8, 8

    key = jax.random.PRNGKey(0)
    k_x, k_enc = jax.random.split(key, 2)
    x = jax.random.normal(k_x, (B, T_tgt, d_model), jnp.float32)
    enc = jax.random.normal(k_enc, (B, T_src, d_model), jnp.float32)

    params = init_decoder_params(jax.random.PRNGKey(1), d_model, d_ff, num_layers)

    # Additive masks (single tile each; broadcast inside the attention call).
    causal = jnp.where(
        jnp.tril(jnp.ones((T_tgt, T_tgt), jnp.bool_)), 0.0, -1e9
    ).astype(jnp.float32)[None]                        # (1, T_tgt, T_tgt)
    src_mask = jnp.zeros((1, T_tgt, T_src), jnp.float32)

    # TODO(synk): dropout (p=0.1) is treated as identity (eval-mode semantics).
    fwd = jax.jit(decoder_forward, static_argnums=(5,))
    out = fwd(x, enc, src_mask, causal, params, num_heads)
    out = jax.block_until_ready(out)
    assert out.shape == (B, T_tgt, d_model)
    print("KERNEL_OK")
</pallas_src>

<mosaic_0001>
module attributes {stable_mosaic.version = 11 : i64} {
  func.func @_mha_kernel(%arg0: i32, %arg1: memref<1x8x32xbf16, #tpu.memory_space<vmem>>, %arg2: memref<1x8x32xbf16, #tpu.memory_space<vmem>>, %arg3: memref<1x8x32xbf16, #tpu.memory_space<vmem>>, %arg4: memref<1x8x8xf32, #tpu.memory_space<vmem>>, %arg5: memref<32x32xbf16, #tpu.memory_space<vmem>>, %arg6: memref<1x32xf32, #tpu.memory_space<vmem>>, %arg7: memref<1x8x32xbf16, #tpu.memory_space<vmem>>) attributes {dimension_semantics = [#tpu.dimension_semantics<parallel>], iteration_bounds = array<i64: 2>, scalar_prefetch = 0 : i64, scratch_operands = 0 : i64, tpu.core_type = #tpu.core_type<tc>, window_params = [{transform_indices = @transform_0, window_bounds = array<i64: 1, 8, 32>}, {transform_indices = @transform_1, window_bounds = array<i64: 1, 8, 32>}, {transform_indices = @transform_2, window_bounds = array<i64: 1, 8, 32>}, {pipeline_mode = #tpu.pipeline_mode<synchronous>, transform_indices = @transform_3, window_bounds = array<i64: 1, 8, 8>}, {pipeline_mode = #tpu.pipeline_mode<synchronous>, transform_indices = @transform_4, window_bounds = array<i64: 32, 32>}, {pipeline_mode = #tpu.pipeline_mode<synchronous>, transform_indices = @transform_5, window_bounds = array<i64: 1, 32>}, {transform_indices = @transform_6, window_bounds = array<i64: 1, 8, 32>}]} {
    %c0 = arith.constant 0 : index
    %c0_0 = arith.constant 0 : index
    %c0_1 = arith.constant 0 : index
    %0 = vector.load %arg1[%c0, %c0_0, %c0_1] : memref<1x8x32xbf16, #tpu.memory_space<vmem>>, vector<1x8x32xbf16>
    %1 = vector.shape_cast %0 : vector<1x8x32xbf16> to vector<8x32xbf16>
    %c0_2 = arith.constant 0 : index
    %c0_3 = arith.constant 0 : index
    %c0_4 = arith.constant 0 : index
    %2 = vector.load %arg2[%c0_2, %c0_3, %c0_4] : memref<1x8x32xbf16, #tpu.memory_space<vmem>>, vector<1x8x32xbf16>
    %3 = vector.shape_cast %2 : vector<1x8x32xbf16> to vector<8x32xbf16>
    %c0_5 = arith.constant 0 : index
    %c0_6 = arith.constant 0 : index
    %c0_7 = arith.constant 0 : index
    %4 = vector.load %arg3[%c0_5, %c0_6, %c0_7] : memref<1x8x32xbf16, #tpu.memory_space<vmem>>, vector<1x8x32xbf16>
    %5 = vector.shape_cast %4 : vector<1x8x32xbf16> to vector<8x32xbf16>
    %c0_8 = arith.constant 0 : index
    %c0_9 = arith.constant 0 : index
    %c0_10 = arith.constant 0 : index
    %6 = vector.load %arg4[%c0_8, %c0_9, %c0_10] : memref<1x8x8xf32, #tpu.memory_space<vmem>>, vector<1x8x8xf32>
    %7 = vector.shape_cast %6 : vector<1x8x8xf32> to vector<8x8xf32>
    %8 = vector.extract_strided_slice %1 {offsets = [0, 0], sizes = [8, 8], strides = [1, 1]} : vector<8x32xbf16> to vector<8x8xbf16>
    %9 = vector.extract_strided_slice %3 {offsets = [0, 0], sizes = [8, 8], strides = [1, 1]} : vector<8x32xbf16> to vector<8x8xbf16>
    %10 = vector.extract_strided_slice %5 {offsets = [0, 0], sizes = [8, 8], strides = [1, 1]} : vector<8x32xbf16> to vector<8x8xbf16>
    %cst = arith.constant dense<0.000000e+00> : vector<8x8xf32>
    %11 = tpu.matmul %8, %9, %cst {dimension_numbers = #tpu.dot_dimension_numbers<[1], [1], [0], [0], [0, 0, 1, 0], [], []>} : vector<8x8xbf16>, vector<8x8xbf16>, vector<8x8xf32> -> vector<8x8xf32>
    %cst_11 = arith.constant 0.353553385 : f32
    %12 = vector.broadcast %cst_11 : f32 to vector<8x8xf32>
    %13 = arith.mulf %11, %12 : vector<8x8xf32>
    %14 = arith.addf %13, %7 : vector<8x8xf32>
    %cst_12 = arith.constant dense<0xFF800000> : vector<8xf32>
    %15 = vector.multi_reduction <maximumf>, %14, %cst_12 [1] : vector<8x8xf32> to vector<8xf32>
    %16 = vector.shape_cast %15 : vector<8xf32> to vector<8x1xf32>
    %17 = vector.broadcast %16 : vector<8x1xf32> to vector<8x8xf32>
    %18 = arith.subf %14, %17 : vector<8x8xf32>
    %19 = math.exp %18 : vector<8x8xf32>
    %cst_13 = arith.constant dense<0.000000e+00> : vector<8xf32>
    %20 = vector.multi_reduction <add>, %19, %cst_13 [1] : vector<8x8xf32> to vector<8xf32>
    %21 = vector.shape_cast %20 : vector<8xf32> to vector<8x1xf32>
    %22 = tpu.reciprocal %21 {approx = true} : vector<8x1xf32> -> vector<8x1xf32>
    %23 = vector.broadcast %22 : vector<8x1xf32> to vector<8x8xf32>
    %24 = arith.mulf %19, %23 : vector<8x8xf32>
    %25 = arith.truncf %24 : vector<8x8xf32> to vector<8x8xbf16>
    %cst_14 = arith.constant dense<0.000000e+00> : vector<8x8xf32>
    %26 = tpu.matmul %25, %10, %cst_14 {dimension_numbers = #tpu.dot_dimension_numbers<[1], [0], [0], [1], [0, 0, 1, 1], [], []>} : vector<8x8xbf16>, vector<8x8xbf16>, vector<8x8xf32> -> vector<8x8xf32>
    %27 = vector.extract_strided_slice %1 {offsets = [0, 8], sizes = [8, 8], strides = [1, 1]} : vector<8x32xbf16> to vector<8x8xbf16>
    %28 = vector.extract_strided_slice %3 {offsets = [0, 8], sizes = [8, 8], strides = [1, 1]} : vector<8x32xbf16> to vector<8x8xbf16>
    %29 = vector.extract_strided_slice %5 {offsets = [0, 8], sizes = [8, 8], strides = [1, 1]} : vector<8x32xbf16> to vector<8x8xbf16>
    %cst_15 = arith.constant dense<0.000000e+00> : vector<8x8xf32>
    %30 = tpu.matmul %27, %28, %cst_15 {dimension_numbers = #tpu.dot_dimension_numbers<[1], [1], [0], [0], [0, 0, 1, 0], [], []>} : vector<8x8xbf16>, vector<8x8xbf16>, vector<8x8xf32> -> vector<8x8xf32>
    %cst_16 = arith.constant 0.353553385 : f32
    %31 = vector.broadcast %cst_16 : f32 to vector<8x8xf32>
    %32 = arith.mulf %30, %31 : vector<8x8xf32>
    %33 = arith.addf %32, %7 : vector<8x8xf32>
    %cst_17 = arith.constant dense<0xFF800000> : vector<8xf32>
    %34 = vector.multi_reduction <maximumf>, %33, %cst_17 [1] : vector<8x8xf32> to vector<8xf32>
    %35 = vector.shape_cast %34 : vector<8xf32> to vector<8x1xf32>
    %36 = vector.broadcast %35 : vector<8x1xf32> to vector<8x8xf32>
    %37 = arith.subf %33, %36 : vector<8x8xf32>
    %38 = math.exp %37 : vector<8x8xf32>
    %cst_18 = arith.constant dense<0.000000e+00> : vector<8xf32>
    %39 = vector.multi_reduction <add>, %38, %cst_18 [1] : vector<8x8xf32> to vector<8xf32>
    %40 = vector.shape_cast %39 : vector<8xf32> to vector<8x1xf32>
    %41 = tpu.reciprocal %40 {approx = true} : vector<8x1xf32> -> vector<8x1xf32>
    %42 = vector.broadcast %41 : vector<8x1xf32> to vector<8x8xf32>
    %43 = arith.mulf %38, %42 : vector<8x8xf32>
    %44 = arith.truncf %43 : vector<8x8xf32> to vector<8x8xbf16>
    %cst_19 = arith.constant dense<0.000000e+00> : vector<8x8xf32>
    %45 = tpu.matmul %44, %29, %cst_19 {dimension_numbers = #tpu.dot_dimension_numbers<[1], [0], [0], [1], [0, 0, 1, 1], [], []>} : vector<8x8xbf16>, vector<8x8xbf16>, vector<8x8xf32> -> vector<8x8xf32>
    %46 = vector.extract_strided_slice %1 {offsets = [0, 16], sizes = [8, 8], strides = [1, 1]} : vector<8x32xbf16> to vector<8x8xbf16>
    %47 = vector.extract_strided_slice %3 {offsets = [0, 16], sizes = [8, 8], strides = [1, 1]} : vector<8x32xbf16> to vector<8x8xbf16>
    %48 = vector.extract_strided_slice %5 {offsets = [0, 16], sizes = [8, 8], strides = [1, 1]} : vector<8x32xbf16> to vector<8x8xbf16>
    %cst_20 = arith.constant dense<0.000000e+00> : vector<8x8xf32>
    %49 = tpu.matmul %46, %47, %cst_20 {dimension_numbers = #tpu.dot_dimension_numbers<[1], [1], [0], [0], [0, 0, 1, 0], [], []>} : vector<8x8xbf16>, vector<8x8xbf16>, vector<8x8xf32> -> vector<8x8xf32>
    %cst_21 = arith.constant 0.353553385 : f32
    %50 = vector.broadcast %cst_21 : f32 to vector<8x8xf32>
    %51 = arith.mulf %49, %50 : vector<8x8xf32>
    %52 = arith.addf %51, %7 : vector<8x8xf32>
    %cst_22 = arith.constant dense<0xFF800000> : vector<8xf32>
    %53 = vector.multi_reduction <maximumf>, %52, %cst_22 [1] : vector<8x8xf32> to vector<8xf32>
    %54 = vector.shape_cast %53 : vector<8xf32> to vector<8x1xf32>
    %55 = vector.broadcast %54 : vector<8x1xf32> to vector<8x8xf32>
    %56 = arith.subf %52, %55 : vector<8x8xf32>
    %57 = math.exp %56 : vector<8x8xf32>
    %cst_23 = arith.constant dense<0.000000e+00> : vector<8xf32>
    %58 = vector.multi_reduction <add>, %57, %cst_23 [1] : vector<8x8xf32> to vector<8xf32>
    %59 = vector.shape_cast %58 : vector<8xf32> to vector<8x1xf32>
    %60 = tpu.reciprocal %59 {approx = true} : vector<8x1xf32> -> vector<8x1xf32>
    %61 = vector.broadcast %60 : vector<8x1xf32> to vector<8x8xf32>
    %62 = arith.mulf %57, %61 : vector<8x8xf32>
    %63 = arith.truncf %62 : vector<8x8xf32> to vector<8x8xbf16>
    %cst_24 = arith.constant dense<0.000000e+00> : vector<8x8xf32>
    %64 = tpu.matmul %63, %48, %cst_24 {dimension_numbers = #tpu.dot_dimension_numbers<[1], [0], [0], [1], [0, 0, 1, 1], [], []>} : vector<8x8xbf16>, vector<8x8xbf16>, vector<8x8xf32> -> vector<8x8xf32>
    %65 = vector.extract_strided_slice %1 {offsets = [0, 24], sizes = [8, 8], strides = [1, 1]} : vector<8x32xbf16> to vector<8x8xbf16>
    %66 = vector.extract_strided_slice %3 {offsets = [0, 24], sizes = [8, 8], strides = [1, 1]} : vector<8x32xbf16> to vector<8x8xbf16>
    %67 = vector.extract_strided_slice %5 {offsets = [0, 24], sizes = [8, 8], strides = [1, 1]} : vector<8x32xbf16> to vector<8x8xbf16>
    %cst_25 = arith.constant dense<0.000000e+00> : vector<8x8xf32>
    %68 = tpu.matmul %65, %66, %cst_25 {dimension_numbers = #tpu.dot_dimension_numbers<[1], [1], [0], [0], [0, 0, 1, 0], [], []>} : vector<8x8xbf16>, vector<8x8xbf16>, vector<8x8xf32> -> vector<8x8xf32>
    %cst_26 = arith.constant 0.353553385 : f32
    %69 = vector.broadcast %cst_26 : f32 to vector<8x8xf32>
    %70 = arith.mulf %68, %69 : vector<8x8xf32>
    %71 = arith.addf %70, %7 : vector<8x8xf32>
    %cst_27 = arith.constant dense<0xFF800000> : vector<8xf32>
    %72 = vector.multi_reduction <maximumf>, %71, %cst_27 [1] : vector<8x8xf32> to vector<8xf32>
    %73 = vector.shape_cast %72 : vector<8xf32> to vector<8x1xf32>
    %74 = vector.broadcast %73 : vector<8x1xf32> to vector<8x8xf32>
    %75 = arith.subf %71, %74 : vector<8x8xf32>
    %76 = math.exp %75 : vector<8x8xf32>
    %cst_28 = arith.constant dense<0.000000e+00> : vector<8xf32>
    %77 = vector.multi_reduction <add>, %76, %cst_28 [1] : vector<8x8xf32> to vector<8xf32>
    %78 = vector.shape_cast %77 : vector<8xf32> to vector<8x1xf32>
    %79 = tpu.reciprocal %78 {approx = true} : vector<8x1xf32> -> vector<8x1xf32>
    %80 = vector.broadcast %79 : vector<8x1xf32> to vector<8x8xf32>
    %81 = arith.mulf %76, %80 : vector<8x8xf32>
    %82 = arith.truncf %81 : vector<8x8xf32> to vector<8x8xbf16>
    %cst_29 = arith.constant dense<0.000000e+00> : vector<8x8xf32>
    %83 = tpu.matmul %82, %67, %cst_29 {dimension_numbers = #tpu.dot_dimension_numbers<[1], [0], [0], [1], [0, 0, 1, 1], [], []>} : vector<8x8xbf16>, vector<8x8xbf16>, vector<8x8xf32> -> vector<8x8xf32>
    %84 = tpu.concatenate %26, %45, %64, %83 in 1 : vector<8x8xf32>, vector<8x8xf32>, vector<8x8xf32>, vector<8x8xf32> -> vector<8x32xf32>
    %85 = arith.truncf %84 : vector<8x32xf32> to vector<8x32xbf16>
    %c0_30 = arith.constant 0 : index
    %c0_31 = arith.constant 0 : index
    %86 = vector.load %arg5[%c0_30, %c0_31] : memref<32x32xbf16, #tpu.memory_space<vmem>>, vector<32x32xbf16>
    %cst_32 = arith.constant dense<0.000000e+00> : vector<8x32xf32>
    %87 = tpu.matmul %85, %86, %cst_32 {dimension_numbers = #tpu.dot_dimension_numbers<[1], [0], [0], [1], [0, 0, 1, 1], [], []>} : vector<8x32xbf16>, vector<32x32xbf16>, vector<8x32xf32> -> vector<8x32xf32>
    %c0_33 = arith.constant 0 : index
    %c0_34 = arith.constant 0 : index
    %88 = vector.load %arg6[%c0_33, %c0_34] : memref<1x32xf32, #tpu.memory_space<vmem>>, vector<1x32xf32>
    %89 = vector.broadcast %88 : vector<1x32xf32> to vector<8x32xf32>
    %90 = arith.addf %87, %89 : vector<8x32xf32>
    %91 = arith.truncf %90 : vector<8x32xf32> to vector<8x32xbf16>
    %c0_35 = arith.constant 0 : index
    %c0_36 = arith.constant 0 : index
    %c0_37 = arith.constant 0 : index
    %92 = vector.load %arg7[%c0_35, %c0_36, %c0_37] : memref<1x8x32xbf16, #tpu.memory_space<vmem>>, vector<1x8x32xbf16>
    %93 = vector.shape_cast %92 : vector<1x8x32xbf16> to vector<8x32xbf16>
    %94 = vector.shape_cast %91 : vector<8x32xbf16> to vector<1x8x32xbf16>
    tpu.vector_store %arg7[%c0_35, %c0_36, %c0_37], %94 {strides = array<i32>} : memref<1x8x32xbf16, #tpu.memory_space<vmem>>, vector<1x8x32xbf16>,
    return
  }
  func.func @transform_0(%arg0: i32) -> (i32, i32, i32) {
    %c0_i32 = arith.constant 0 : i32
    %c0_i32_0 = arith.constant 0 : i32
    %c0_i32_1 = arith.constant 0 : i32
    return %arg0, %c0_i32, %c0_i32_0 : i32, i32, i32
  }
  func.func @transform_1(%arg0: i32) -> (i32, i32, i32) {
    %c0_i32 = arith.constant 0 : i32
    %c0_i32_0 = arith.constant 0 : i32
    %c0_i32_1 = arith.constant 0 : i32
    return %arg0, %c0_i32, %c0_i32_0 : i32, i32, i32
  }
  func.func @transform_2(%arg0: i32) -> (i32, i32, i32) {
    %c0_i32 = arith.constant 0 : i32
    %c0_i32_0 = arith.constant 0 : i32
    %c0_i32_1 = arith.constant 0 : i32
    return %arg0, %c0_i32, %c0_i32_0 : i32, i32, i32
  }
  func.func @transform_3(%arg0: i32) -> (i32, i32, i32) {
    %c0_i32 = arith.constant 0 : i32
    %c0_i32_0 = arith.constant 0 : i32
    %c0_i32_1 = arith.constant 0 : i32
    %c0_i32_2 = arith.constant 0 : i32
    return %c0_i32, %c0_i32_0, %c0_i32_1 : i32, i32, i32
  }
  func.func @transform_4(%arg0: i32) -> (i32, i32) {
    %c0_i32 = arith.constant 0 : i32
    %c0_i32_0 = arith.constant 0 : i32
    %c0_i32_1 = arith.constant 0 : i32
    return %c0_i32, %c0_i32_0 : i32, i32
  }
  func.func @transform_5(%arg0: i32) -> (i32, i32) {
    %c0_i32 = arith.constant 0 : i32
    %c0_i32_0 = arith.constant 0 : i32
    %c0_i32_1 = arith.constant 0 : i32
    return %c0_i32, %c0_i32_0 : i32, i32
  }
  func.func @transform_6(%arg0: i32) -> (i32, i32, i32) {
    %c0_i32 = arith.constant 0 : i32
    %c0_i32_0 = arith.constant 0 : i32
    %c0_i32_1 = arith.constant 0 : i32
    return %arg0, %c0_i32, %c0_i32_0 : i32, i32, i32
  }
}

module attributes {stable_mosaic.version = 11 : i64} {
  func.func @_matmul_bias_kernel(%arg0: i32, %arg1: i32, %arg2: i32, %arg3: memref<16x32xbf16, #tpu.memory_space<vmem>>, %arg4: memref<32x96xbf16, #tpu.memory_space<vmem>>, %arg5: memref<1x96xf32, #tpu.memory_space<vmem>>, %arg6: memref<16x96xbf16, #tpu.memory_space<vmem>>, %arg7: memref<16x96xf32, #tpu.memory_space<vmem>>) attributes {dimension_semantics = [#tpu.dimension_semantics<parallel>, #tpu.dimension_semantics<parallel>, #tpu.dimension_semantics<arbitrary>], iteration_bounds = array<i64: 1, 1, 1>, scalar_prefetch = 0 : i64, scratch_operands = 1 : i64, tpu.core_type = #tpu.core_type<tc>, window_params = [{transform_indices = @transform_0, window_bounds = array<i64: 16, 32>}, {transform_indices = @transform_1, window_bounds = array<i64: 32, 96>}, {transform_indices = @transform_2, window_bounds = array<i64: 1, 96>}, {transform_indices = @transform_3, window_bounds = array<i64: 16, 96>}]} {
    %c0_i32 = arith.constant 0 : i32
    %0 = arith.cmpi eq, %arg2, %c0_i32 : i32
    %1 = arith.extui %0 : i1 to i32
    %c0_i32_0 = arith.constant 0 : i32
    %2 = arith.cmpi ne, %1, %c0_i32_0 : i32
    scf.if %2 {
      %cst_10 = arith.constant 0.000000e+00 : f32
      %12 = vector.broadcast %cst_10 : f32 to vector<16x96xf32>
      %c0_11 = arith.constant 0 : index
      %c0_12 = arith.constant 0 : index
      %13 = vector.load %arg7[%c0_11, %c0_12] : memref<16x96xf32, #tpu.memory_space<vmem>>, vector<16x96xf32>
      tpu.vector_store %arg7[%c0_11, %c0_12], %12 {strides = array<i32>} : memref<16x96xf32, #tpu.memory_space<vmem>>, vector<16x96xf32>,
    } else {
    }
    %c0 = arith.constant 0 : index
    %c0_1 = arith.constant 0 : index
    %3 = vector.load %arg7[%c0, %c0_1] : memref<16x96xf32, #tpu.memory_space<vmem>>, vector<16x96xf32>
    %c0_2 = arith.constant 0 : index
    %c0_3 = arith.constant 0 : index
    %4 = vector.load %arg3[%c0_2, %c0_3] : memref<16x32xbf16, #tpu.memory_space<vmem>>, vector<16x32xbf16>
    %c0_4 = arith.constant 0 : index
    %c0_5 = arith.constant 0 : index
    %5 = vector.load %arg4[%c0_4, %c0_5] : memref<32x96xbf16, #tpu.memory_space<vmem>>, vector<32x96xbf16>
    %cst = arith.constant dense<0.000000e+00> : vector<16x96xf32>
    %6 = tpu.matmul %4, %5, %cst {dimension_numbers = #tpu.dot_dimension_numbers<[1], [0], [0], [1], [0, 0, 1, 1], [], []>} : vector<16x32xbf16>, vector<32x96xbf16>, vector<16x96xf32> -> vector<16x96xf32>
    %7 = arith.addf %3, %6 : vector<16x96xf32>
    %c0_6 = arith.constant 0 : index
    %c0_7 = arith.constant 0 : index
    %8 = vector.load %arg7[%c0_6, %c0_7] : memref<16x96xf32, #tpu.memory_space<vmem>>, vector<16x96xf32>
    tpu.vector_store %arg7[%c0_6, %c0_7], %7 {strides = array<i32>} : memref<16x96xf32, #tpu.memory_space<vmem>>, vector<16x96xf32>,
    %c0_i32_8 = arith.constant 0 : i32
    %9 = arith.cmpi eq, %arg2, %c0_i32_8 : i32
    %10 = arith.extui %9 : i1 to i32
    %c0_i32_9 = arith.constant 0 : i32
    %11 = arith.cmpi ne, %10, %c0_i32_9 : i32
    scf.if %11 {
      %c0_10 = arith.constant 0 : index
      %c0_11 = arith.constant 0 : index
      %12 = vector.load %arg7[%c0_10, %c0_11] : memref<16x96xf32, #tpu.memory_space<vmem>>, vector<16x96xf32>
      %c0_12 = arith.constant 0 : index
      %c0_13 = arith.constant 0 : index
      %13 = vector.load %arg5[%c0_12, %c0_13] : memref<1x96xf32, #tpu.memory_space<vmem>>, vector<1x96xf32>
      %14 = vector.broadcast %13 : vector<1x96xf32> to vector<16x96xf32>
      %15 = arith.addf %12, %14 : vector<16x96xf32>
      %16 = arith.truncf %15 : vector<16x96xf32> to vector<16x96xbf16>
      %c0_14 = arith.constant 0 : index
      %c0_15 = arith.constant 0 : index
      %17 = vector.load %arg6[%c0_14, %c0_15] : memref<16x96xbf16, #tpu.memory_space<vmem>>, vector<16x96xbf16>
      tpu.vector_store %arg6[%c0_14, %c0_15], %16 {strides = array<i32>} : memref<16x96xbf16, #tpu.memory_space<vmem>>, vector<16x96xbf16>,
    } else {
    }
    return
  }
  func.func @transform_0(%arg0: i32, %arg1: i32, %arg2: i32) -> (i32, i32) {
    %c0_i32 = arith.constant 0 : i32
    return %arg0, %arg2 : i32, i32
  }
  func.func @transform_1(%arg0: i32, %arg1: i32, %arg2: i32) -> (i32, i32) {
    %c0_i32 = arith.constant 0 : i32
    return %arg2, %arg1 : i32, i32
  }
  func.func @transform_2(%arg0: i32, %arg1: i32, %arg2: i32) -> (i32, i32) {
    %c0_i32 = arith.constant 0 : i32
    %c0_i32_0 = arith.constant 0 : i32
    return %c0_i32, %arg1 : i32, i32
  }
  func.func @transform_3(%arg0: i32, %arg1: i32, %arg2: i32) -> (i32, i32) {
    %c0_i32 = arith.constant 0 : i32
    return %arg0, %arg1 : i32, i32
  }
}

module attributes {stable_mosaic.version = 11 : i64} {
  func.func @_matmul_bias_kernel(%arg0: i32, %arg1: i32, %arg2: i32, %arg3: memref<16x32xbf16, #tpu.memory_space<vmem>>, %arg4: memref<32x32xbf16, #tpu.memory_space<vmem>>, %arg5: memref<1x32xf32, #tpu.memory_space<vmem>>, %arg6: memref<16x32xbf16, #tpu.memory_space<vmem>>, %arg7: memref<16x32xf32, #tpu.memory_space<vmem>>) attributes {dimension_semantics = [#tpu.dimension_semantics<parallel>, #tpu.dimension_semantics<parallel>, #tpu.dimension_semantics<arbitrary>], iteration_bounds = array<i64: 1, 1, 1>, scalar_prefetch = 0 : i64, scratch_operands = 1 : i64, tpu.core_type = #tpu.core_type<tc>, window_params = [{transform_indices = @transform_0, window_bounds = array<i64: 16, 32>}, {transform_indices = @transform_1, window_bounds = array<i64: 32, 32>}, {transform_indices = @transform_2, window_bounds = array<i64: 1, 32>}, {transform_indices = @transform_3, window_bounds = array<i64: 16, 32>}]} {
    %c0_i32 = arith.constant 0 : i32
    %0 = arith.cmpi eq, %arg2, %c0_i32 : i32
    %1 = arith.extui %0 : i1 to i32
    %c0_i32_0 = arith.constant 0 : i32
    %2 = arith.cmpi ne, %1, %c0_i32_0 : i32
    scf.if %2 {
      %cst_10 = arith.constant 0.000000e+00 : f32
      %12 = vector.broadcast %cst_10 : f32 to vector<16x32xf32>
      %c0_11 = arith.constant 0 : index
      %c0_12 = arith.constant 0 : index
      %13 = vector.load %arg7[%c0_11, %c0_12] : memref<16x32xf32, #tpu.memory_space<vmem>>, vector<16x32xf32>
      tpu.vector_store %arg7[%c0_11, %c0_12], %12 {strides = array<i32>} : memref<16x32xf32, #tpu.memory_space<vmem>>, vector<16x32xf32>,
    } else {
    }
    %c0 = arith.constant 0 : index
    %c0_1 = arith.constant 0 : index
    %3 = vector.load %arg7[%c0, %c0_1] : memref<16x32xf32, #tpu.memory_space<vmem>>, vector<16x32xf32>
    %c0_2 = arith.constant 0 : index
    %c0_3 = arith.constant 0 : index
    %4 = vector.load %arg3[%c0_2, %c0_3] : memref<16x32xbf16, #tpu.memory_space<vmem>>, vector<16x32xbf16>
    %c0_4 = arith.constant 0 : index
    %c0_5 = arith.constant 0 : index
    %5 = vector.load %arg4[%c0_4, %c0_5] : memref<32x32xbf16, #tpu.memory_space<vmem>>, vector<32x32xbf16>
    %cst = arith.constant dense<0.000000e+00> : vector<16x32xf32>
    %6 = tpu.matmul %4, %5, %cst {dimension_numbers = #tpu.dot_dimension_numbers<[1], [0], [0], [1], [0, 0, 1, 1], [], []>} : vector<16x32xbf16>, vector<32x32xbf16>, vector<16x32xf32> -> vector<16x32xf32>
    %7 = arith.addf %3, %6 : vector<16x32xf32>
    %c0_6 = arith.constant 0 : index
    %c0_7 = arith.constant 0 : index
    %8 = vector.load %arg7[%c0_6, %c0_7] : memref<16x32xf32, #tpu.memory_space<vmem>>, vector<16x32xf32>
    tpu.vector_store %arg7[%c0_6, %c0_7], %7 {strides = array<i32>} : memref<16x32xf32, #tpu.memory_space<vmem>>, vector<16x32xf32>,
    %c0_i32_8 = arith.constant 0 : i32
    %9 = arith.cmpi eq, %arg2, %c0_i32_8 : i32
    %10 = arith.extui %9 : i1 to i32
    %c0_i32_9 = arith.constant 0 : i32
    %11 = arith.cmpi ne, %10, %c0_i32_9 : i32
    scf.if %11 {
      %c0_10 = arith.constant 0 : index
      %c0_11 = arith.constant 0 : index
      %12 = vector.load %arg7[%c0_10, %c0_11] : memref<16x32xf32, #tpu.memory_space<vmem>>, vector<16x32xf32>
      %c0_12 = arith.constant 0 : index
      %c0_13 = arith.constant 0 : index
      %13 = vector.load %arg5[%c0_12, %c0_13] : memref<1x32xf32, #tpu.memory_space<vmem>>, vector<1x32xf32>
      %14 = vector.broadcast %13 : vector<1x32xf32> to vector<16x32xf32>
      %15 = arith.addf %12, %14 : vector<16x32xf32>
      %16 = arith.truncf %15 : vector<16x32xf32> to vector<16x32xbf16>
      %c0_14 = arith.constant 0 : index
      %c0_15 = arith.constant 0 : index
      %17 = vector.load %arg6[%c0_14, %c0_15] : memref<16x32xbf16, #tpu.memory_space<vmem>>, vector<16x32xbf16>
      tpu.vector_store %arg6[%c0_14, %c0_15], %16 {strides = array<i32>} : memref<16x32xbf16, #tpu.memory_space<vmem>>, vector<16x32xbf16>,
    } else {
    }
    return
  }
  func.func @transform_0(%arg0: i32, %arg1: i32, %arg2: i32) -> (i32, i32) {
    %c0_i32 = arith.constant 0 : i32
    return %arg0, %arg2 : i32, i32
  }
  func.func @transform_1(%arg0: i32, %arg1: i32, %arg2: i32) -> (i32, i32) {
    %c0_i32 = arith.constant 0 : i32
    return %arg2, %arg1 : i32, i32
  }
  func.func @transform_2(%arg0: i32, %arg1: i32, %arg2: i32) -> (i32, i32) {
    %c0_i32 = arith.constant 0 : i32
    %c0_i32_0 = arith.constant 0 : i32
    return %c0_i32, %arg1 : i32, i32
  }
  func.func @transform_3(%arg0: i32, %arg1: i32, %arg2: i32) -> (i32, i32) {
    %c0_i32 = arith.constant 0 : i32
    return %arg0, %arg1 : i32, i32
  }
}

module attributes {stable_mosaic.version = 11 : i64} {
  func.func @_add_ln_kernel(%arg0: i32, %arg1: memref<16x32xbf16, #tpu.memory_space<vmem>>, %arg2: memref<16x32xbf16, #tpu.memory_space<vmem>>, %arg3: memref<1x32xf32, #tpu.memory_space<vmem>>, %arg4: memref<1x32xf32, #tpu.memory_space<vmem>>, %arg5: memref<16x32xbf16, #tpu.memory_space<vmem>>) attributes {dimension_semantics = [#tpu.dimension_semantics<parallel>], iteration_bounds = array<i64: 1>, scalar_prefetch = 0 : i64, scratch_operands = 0 : i64, tpu.core_type = #tpu.core_type<tc>, window_params = [{transform_indices = @transform_0, window_bounds = array<i64: 16, 32>}, {transform_indices = @transform_1, window_bounds = array<i64: 16, 32>}, {pipeline_mode = #tpu.pipeline_mode<synchronous>, transform_indices = @transform_2, window_bounds = array<i64: 1, 32>}, {pipeline_mode = #tpu.pipeline_mode<synchronous>, transform_indices = @transform_3, window_bounds = array<i64: 1, 32>}, {transform_indices = @transform_4, window_bounds = array<i64: 16, 32>}]} {
    %c0 = arith.constant 0 : index
    %c0_0 = arith.constant 0 : index
    %0 = vector.load %arg1[%c0, %c0_0] : memref<16x32xbf16, #tpu.memory_space<vmem>>, vector<16x32xbf16>
    %1 = arith.extf %0 : vector<16x32xbf16> to vector<16x32xf32>
    %c0_1 = arith.constant 0 : index
    %c0_2 = arith.constant 0 : index
    %2 = vector.load %arg2[%c0_1, %c0_2] : memref<16x32xbf16, #tpu.memory_space<vmem>>, vector<16x32xbf16>
    %3 = arith.extf %2 : vector<16x32xbf16> to vector<16x32xf32>
    %4 = arith.addf %1, %3 : vector<16x32xf32>
    %cst = arith.constant dense<0.000000e+00> : vector<16xf32>
    %5 = vector.multi_reduction <add>, %4, %cst [1] : vector<16x32xf32> to vector<16xf32>
    %6 = vector.shape_cast %5 : vector<16xf32> to vector<16x1xf32>
    %cst_3 = arith.constant 3.200000e+01 : f32
    %7 = vector.broadcast %cst_3 : f32 to vector<16x1xf32>
    %8 = arith.divf %6, %7 : vector<16x1xf32>
    %9 = vector.broadcast %8 : vector<16x1xf32> to vector<16x32xf32>
    %10 = arith.subf %4, %9 : vector<16x32xf32>
    %11 = arith.mulf %10, %10 : vector<16x32xf32>
    %cst_4 = arith.constant dense<0.000000e+00> : vector<16xf32>
    %12 = vector.multi_reduction <add>, %11, %cst_4 [1] : vector<16x32xf32> to vector<16xf32>
    %13 = vector.shape_cast %12 : vector<16xf32> to vector<16x1xf32>
    %cst_5 = arith.constant 3.200000e+01 : f32
    %14 = vector.broadcast %cst_5 : f32 to vector<16x1xf32>
    %15 = arith.divf %13, %14 : vector<16x1xf32>
    %16 = vector.broadcast %8 : vector<16x1xf32> to vector<16x32xf32>
    %17 = arith.subf %4, %16 : vector<16x32xf32>
    %cst_6 = arith.constant 9.99999974E-6 : f32
    %18 = vector.broadcast %cst_6 : f32 to vector<16x1xf32>
    %19 = arith.addf %15, %18 : vector<16x1xf32>
    %20 = math.rsqrt %19 : vector<16x1xf32>
    %21 = vector.broadcast %20 : vector<16x1xf32> to vector<16x32xf32>
    %22 = arith.mulf %17, %21 : vector<16x32xf32>
    %c0_7 = arith.constant 0 : index
    %c0_8 = arith.constant 0 : index
    %23 = vector.load %arg3[%c0_7, %c0_8] : memref<1x32xf32, #tpu.memory_space<vmem>>, vector<1x32xf32>
    %24 = vector.broadcast %23 : vector<1x32xf32> to vector<16x32xf32>
    %25 = arith.mulf %22, %24 : vector<16x32xf32>
    %c0_9 = arith.constant 0 : index
    %c0_10 = arith.constant 0 : index
    %26 = vector.load %arg4[%c0_9, %c0_10] : memref<1x32xf32, #tpu.memory_space<vmem>>, vector<1x32xf32>
    %27 = vector.broadcast %26 : vector<1x32xf32> to vector<16x32xf32>
    %28 = arith.addf %25, %27 : vector<16x32xf32>
    %29 = arith.truncf %28 : vector<16x32xf32> to vector<16x32xbf16>
    %c0_11 = arith.constant 0 : index
    %c0_12 = arith.constant 0 : index
    %30 = vector.load %arg5[%c0_11, %c0_12] : memref<16x32xbf16, #tpu.memory_space<vmem>>, vector<16x32xbf16>
    tpu.vector_store %arg5[%c0_11, %c0_12], %29 {strides = array<i32>} : memref<16x32xbf16, #tpu.memory_space<vmem>>, vector<16x32xbf16>,
    return
  }
  func.func @transform_0(%arg0: i32) -> (i32, i32) {
    %c0_i32 = arith.constant 0 : i32
    %c0_i32_0 = arith.constant 0 : i32
    return %arg0, %c0_i32 : i32, i32
  }
  func.func @transform_1(%arg0: i32) -> (i32, i32) {
    %c0_i32 = arith.constant 0 : i32
    %c0_i32_0 = arith.constant 0 : i32
    return %arg0, %c0_i32 : i32, i32
  }
  func.func @transform_2(%arg0: i32) -> (i32, i32) {
    %c0_i32 = arith.constant 0 : i32
    %c0_i32_0 = arith.constant 0 : i32
    %c0_i32_1 = arith.constant 0 : i32
    return %c0_i32, %c0_i32_0 : i32, i32
  }
  func.func @transform_3(%arg0: i32) -> (i32, i32) {
    %c0_i32 = arith.constant 0 : i32
    %c0_i32_0 = arith.constant 0 : i32
    %c0_i32_1 = arith.constant 0 : i32
    return %c0_i32, %c0_i32_0 : i32, i32
  }
  func.func @transform_4(%arg0: i32) -> (i32, i32) {
    %c0_i32 = arith.constant 0 : i32
    %c0_i32_0 = arith.constant 0 : i32
    return %arg0, %c0_i32 : i32, i32
  }
}

module attributes {stable_mosaic.version = 11 : i64} {
  func.func @_matmul_bias_kernel(%arg0: i32, %arg1: i32, %arg2: i32, %arg3: memref<16x32xbf16, #tpu.memory_space<vmem>>, %arg4: memref<32x64xbf16, #tpu.memory_space<vmem>>, %arg5: memref<1x64xf32, #tpu.memory_space<vmem>>, %arg6: memref<16x64xbf16, #tpu.memory_space<vmem>>, %arg7: memref<16x64xf32, #tpu.memory_space<vmem>>) attributes {dimension_semantics = [#tpu.dimension_semantics<parallel>, #tpu.dimension_semantics<parallel>, #tpu.dimension_semantics<arbitrary>], iteration_bounds = array<i64: 1, 1, 1>, scalar_prefetch = 0 : i64, scratch_operands = 1 : i64, tpu.core_type = #tpu.core_type<tc>, window_params = [{transform_indices = @transform_0, window_bounds = array<i64: 16, 32>}, {transform_indices = @transform_1, window_bounds = array<i64: 32, 64>}, {transform_indices = @transform_2, window_bounds = array<i64: 1, 64>}, {transform_indices = @transform_3, window_bounds = array<i64: 16, 64>}]} {
    %c0_i32 = arith.constant 0 : i32
    %0 = arith.cmpi eq, %arg2, %c0_i32 : i32
    %1 = arith.extui %0 : i1 to i32
    %c0_i32_0 = arith.constant 0 : i32
    %2 = arith.cmpi ne, %1, %c0_i32_0 : i32
    scf.if %2 {
      %cst_10 = arith.constant 0.000000e+00 : f32
      %12 = vector.broadcast %cst_10 : f32 to vector<16x64xf32>
      %c0_11 = arith.constant 0 : index
      %c0_12 = arith.constant 0 : index
      %13 = vector.load %arg7[%c0_11, %c0_12] : memref<16x64xf32, #tpu.memory_space<vmem>>, vector<16x64xf32>
      tpu.vector_store %arg7[%c0_11, %c0_12], %12 {strides = array<i32>} : memref<16x64xf32, #tpu.memory_space<vmem>>, vector<16x64xf32>,
    } else {
    }
    %c0 = arith.constant 0 : index
    %c0_1 = arith.constant 0 : index
    %3 = vector.load %arg7[%c0, %c0_1] : memref<16x64xf32, #tpu.memory_space<vmem>>, vector<16x64xf32>
    %c0_2 = arith.constant 0 : index
    %c0_3 = arith.constant 0 : index
    %4 = vector.load %arg3[%c0_2, %c0_3] : memref<16x32xbf16, #tpu.memory_space<vmem>>, vector<16x32xbf16>
    %c0_4 = arith.constant 0 : index
    %c0_5 = arith.constant 0 : index
    %5 = vector.load %arg4[%c0_4, %c0_5] : memref<32x64xbf16, #tpu.memory_space<vmem>>, vector<32x64xbf16>
    %cst = arith.constant dense<0.000000e+00> : vector<16x64xf32>
    %6 = tpu.matmul %4, %5, %cst {dimension_numbers = #tpu.dot_dimension_numbers<[1], [0], [0], [1], [0, 0, 1, 1], [], []>} : vector<16x32xbf16>, vector<32x64xbf16>, vector<16x64xf32> -> vector<16x64xf32>
    %7 = arith.addf %3, %6 : vector<16x64xf32>
    %c0_6 = arith.constant 0 : index
    %c0_7 = arith.constant 0 : index
    %8 = vector.load %arg7[%c0_6, %c0_7] : memref<16x64xf32, #tpu.memory_space<vmem>>, vector<16x64xf32>
    tpu.vector_store %arg7[%c0_6, %c0_7], %7 {strides = array<i32>} : memref<16x64xf32, #tpu.memory_space<vmem>>, vector<16x64xf32>,
    %c0_i32_8 = arith.constant 0 : i32
    %9 = arith.cmpi eq, %arg2, %c0_i32_8 : i32
    %10 = arith.extui %9 : i1 to i32
    %c0_i32_9 = arith.constant 0 : i32
    %11 = arith.cmpi ne, %10, %c0_i32_9 : i32
    scf.if %11 {
      %c0_10 = arith.constant 0 : index
      %c0_11 = arith.constant 0 : index
      %12 = vector.load %arg7[%c0_10, %c0_11] : memref<16x64xf32, #tpu.memory_space<vmem>>, vector<16x64xf32>
      %c0_12 = arith.constant 0 : index
      %c0_13 = arith.constant 0 : index
      %13 = vector.load %arg5[%c0_12, %c0_13] : memref<1x64xf32, #tpu.memory_space<vmem>>, vector<1x64xf32>
      %14 = vector.broadcast %13 : vector<1x64xf32> to vector<16x64xf32>
      %15 = arith.addf %12, %14 : vector<16x64xf32>
      %16 = arith.truncf %15 : vector<16x64xf32> to vector<16x64xbf16>
      %c0_14 = arith.constant 0 : index
      %c0_15 = arith.constant 0 : index
      %17 = vector.load %arg6[%c0_14, %c0_15] : memref<16x64xbf16, #tpu.memory_space<vmem>>, vector<16x64xbf16>
      tpu.vector_store %arg6[%c0_14, %c0_15], %16 {strides = array<i32>} : memref<16x64xbf16, #tpu.memory_space<vmem>>, vector<16x64xbf16>,
    } else {
    }
    return
  }
  func.func @transform_0(%arg0: i32, %arg1: i32, %arg2: i32) -> (i32, i32) {
    %c0_i32 = arith.constant 0 : i32
    return %arg0, %arg2 : i32, i32
  }
  func.func @transform_1(%arg0: i32, %arg1: i32, %arg2: i32) -> (i32, i32) {
    %c0_i32 = arith.constant 0 : i32
    return %arg2, %arg1 : i32, i32
  }
  func.func @transform_2(%arg0: i32, %arg1: i32, %arg2: i32) -> (i32, i32) {
    %c0_i32 = arith.constant 0 : i32
    %c0_i32_0 = arith.constant 0 : i32
    return %c0_i32, %arg1 : i32, i32
  }
  func.func @transform_3(%arg0: i32, %arg1: i32, %arg2: i32) -> (i32, i32) {
    %c0_i32 = arith.constant 0 : i32
    return %arg0, %arg1 : i32, i32
  }
}

module attributes {stable_mosaic.version = 11 : i64} {
  func.func @_ffn_kernel(%arg0: i32, %arg1: memref<16x32xbf16, #tpu.memory_space<vmem>>, %arg2: memref<32x64xbf16, #tpu.memory_space<vmem>>, %arg3: memref<1x64xf32, #tpu.memory_space<vmem>>, %arg4: memref<64x32xbf16, #tpu.memory_space<vmem>>, %arg5: memref<1x32xf32, #tpu.memory_space<vmem>>, %arg6: memref<16x32xbf16, #tpu.memory_space<vmem>>) attributes {dimension_semantics = [#tpu.dimension_semantics<parallel>], iteration_bounds = array<i64: 1>, scalar_prefetch = 0 : i64, scratch_operands = 0 : i64, tpu.core_type = #tpu.core_type<tc>, window_params = [{transform_indices = @transform_0, window_bounds = array<i64: 16, 32>}, {pipeline_mode = #tpu.pipeline_mode<synchronous>, transform_indices = @transform_1, window_bounds = array<i64: 32, 64>}, {pipeline_mode = #tpu.pipeline_mode<synchronous>, transform_indices = @transform_2, window_bounds = array<i64: 1, 64>}, {pipeline_mode = #tpu.pipeline_mode<synchronous>, transform_indices = @transform_3, window_bounds = array<i64: 64, 32>}, {pipeline_mode = #tpu.pipeline_mode<synchronous>, transform_indices = @transform_4, window_bounds = array<i64: 1, 32>}, {transform_indices = @transform_5, window_bounds = array<i64: 16, 32>}]} {
    %c0 = arith.constant 0 : index
    %c0_0 = arith.constant 0 : index
    %0 = vector.load %arg1[%c0, %c0_0] : memref<16x32xbf16, #tpu.memory_space<vmem>>, vector<16x32xbf16>
    %c0_1 = arith.constant 0 : index
    %c0_2 = arith.constant 0 : index
    %1 = vector.load %arg2[%c0_1, %c0_2] : memref<32x64xbf16, #tpu.memory_space<vmem>>, vector<32x64xbf16>
    %cst = arith.constant dense<0.000000e+00> : vector<16x64xf32>
    %2 = tpu.matmul %0, %1, %cst {dimension_numbers = #tpu.dot_dimension_numbers<[1], [0], [0], [1], [0, 0, 1, 1], [], []>} : vector<16x32xbf16>, vector<32x64xbf16>, vector<16x64xf32> -> vector<16x64xf32>
    %c0_3 = arith.constant 0 : index
    %c0_4 = arith.constant 0 : index
    %3 = vector.load %arg3[%c0_3, %c0_4] : memref<1x64xf32, #tpu.memory_space<vmem>>, vector<1x64xf32>
    %4 = vector.broadcast %3 : vector<1x64xf32> to vector<16x64xf32>
    %5 = arith.addf %2, %4 : vector<16x64xf32>
    %cst_5 = arith.constant 0.000000e+00 : f32
    %6 = vector.broadcast %cst_5 : f32 to vector<16x64xf32>
    %7 = arith.maximumf %5, %6 : vector<16x64xf32>
    %8 = arith.truncf %7 : vector<16x64xf32> to vector<16x64xbf16>
    %c0_6 = arith.constant 0 : index
    %c0_7 = arith.constant 0 : index
    %9 = vector.load %arg4[%c0_6, %c0_7] : memref<64x32xbf16, #tpu.memory_space<vmem>>, vector<64x32xbf16>
    %cst_8 = arith.constant dense<0.000000e+00> : vector<16x32xf32>
    %10 = tpu.matmul %8, %9, %cst_8 {dimension_numbers = #tpu.dot_dimension_numbers<[1], [0], [0], [1], [0, 0, 1, 1], [], []>} : vector<16x64xbf16>, vector<64x32xbf16>, vector<16x32xf32> -> vector<16x32xf32>
    %c0_9 = arith.constant 0 : index
    %c0_10 = arith.constant 0 : index
    %11 = vector.load %arg5[%c0_9, %c0_10] : memref<1x32xf32, #tpu.memory_space<vmem>>, vector<1x32xf32>
    %12 = vector.broadcast %11 : vector<1x32xf32> to vector<16x32xf32>
    %13 = arith.addf %10, %12 : vector<16x32xf32>
    %14 = arith.truncf %13 : vector<16x32xf32> to vector<16x32xbf16>
    %c0_11 = arith.constant 0 : index
    %c0_12 = arith.constant 0 : index
    %15 = vector.load %arg6[%c0_11, %c0_12] : memref<16x32xbf16, #tpu.memory_space<vmem>>, vector<16x32xbf16>
    tpu.vector_store %arg6[%c0_11, %c0_12], %14 {strides = array<i32>} : memref<16x32xbf16, #tpu.memory_space<vmem>>, vector<16x32xbf16>,
    return
  }
  func.func @transform_0(%arg0: i32) -> (i32, i32) {
    %c0_i32 = arith.constant 0 : i32
    %c0_i32_0 = arith.constant 0 : i32
    return %arg0, %c0_i32 : i32, i32
  }
  func.func @transform_1(%arg0: i32) -> (i32, i32) {
    %c0_i32 = arith.constant 0 : i32
    %c0_i32_0 = arith.constant 0 : i32
    %c0_i32_1 = arith.constant 0 : i32
    return %c0_i32, %c0_i32_0 : i32, i32
  }
  func.func @transform_2(%arg0: i32) -> (i32, i32) {
    %c0_i32 = arith.constant 0 : i32
    %c0_i32_0 = arith.constant 0 : i32
    %c0_i32_1 = arith.constant 0 : i32
    return %c0_i32, %c0_i32_0 : i32, i32
  }
  func.func @transform_3(%arg0: i32) -> (i32, i32) {
    %c0_i32 = arith.constant 0 : i32
    %c0_i32_0 = arith.constant 0 : i32
    %c0_i32_1 = arith.constant 0 : i32
    return %c0_i32, %c0_i32_0 : i32, i32
  }
  func.func @transform_4(%arg0: i32) -> (i32, i32) {
    %c0_i32 = arith.constant 0 : i32
    %c0_i32_0 = arith.constant 0 : i32
    %c0_i32_1 = arith.constant 0 : i32
    return %c0_i32, %c0_i32_0 : i32, i32
  }
  func.func @transform_5(%arg0: i32) -> (i32, i32) {
    %c0_i32 = arith.constant 0 : i32
    %c0_i32_0 = arith.constant 0 : i32
    return %arg0, %c0_i32 : i32, i32
  }
}

</mosaic_0001>

<llo_original>
// kernel: decoder_forward.21
$region0: #{decoder_forward.21}
  #allocation0 [shape = 'u32[]', space=smem, size = 0x4, offset = 0x4, fixed_abs, tag = 'smem constant byte address 0x4 - core index']
  #allocation1 [shape = 'u32[144,128]{1,0:T(1,128)}', space=vmem, size = 0x12000, scoped, tag = 'internal scratch']
  #allocation2 [shape = 'f32[16,32]{1,0:T(8,128)}', space=vmem, size = 0x2000, scoped, tag = 'scratch operand']
  %s0 = inlined_call_operand.vmem [shape: bf16[16,32], index: 0, kind: input, shape index: {}]
  %s1 = inlined_call_operand.vmem [shape: bf16[32,32], index: 1, kind: input, shape index: {}]
  %s2 = inlined_call_operand.vmem [shape: f32[1,32], index: 2, kind: input, shape index: {}]
  %s3 = inlined_call_operand.vmem [shape: bf16[16,32], index: 3, kind: output, shape index: {}]
  %s4 = sld [smem:[#allocation0]]
  $region30: #{decoder_forward.21} parent=0
    _
  %s6 = ssub.s32 1, %s4
  %s7 = scalar_select 0, %s6, %s4
  // Predicated region
  $region2: #{decoder_forward.21} parent=0 // pred_check
    _
  $region3: #{decoder_forward.21} parent=0 // pred_check_branch
    %9 = sbr.rel (0) target = $region5
  $region4: #{decoder_forward.21} parent=0 // pred_region
    _
  $region5: #{decoder_forward.21} parent=0 // pred_fallthru
    _
  // Predicated region
  $region6: #{decoder_forward.21} parent=0 // pred_check
    _
  $region7: #{decoder_forward.21} parent=0 // pred_check_branch
    %11 = sbr.rel (0) target = $region9
  $region8: #{decoder_forward.21} parent=0 // pred_region
    _
  $region9: #{decoder_forward.21} parent=0 // pred_fallthru
    _
  // Predicated region
  $region10: #{decoder_forward.21} parent=0 // pred_check
    _
  $region11: #{decoder_forward.21} parent=0 // pred_check_branch
    %13 = sbr.rel (0) target = $region13
  $region12: #{decoder_forward.21} parent=0 // pred_region
    _
  $region13: #{decoder_forward.21} parent=0 // pred_fallthru
    _
  %p15 = scmp.eq.s32.totalorder 0, 0
  // Predicated region
  $region14: #{decoder_forward.21} parent=0 // pred_check
    %p16 = pneg %p15
  $region15: #{decoder_forward.21} parent=0 // pred_check_branch
    %18 = sbr.rel (%p16) target = $region17
  $region16: #{decoder_forward.21} parent=0 // pred_region
    %vm19 = vcmask 261120
    %20 = vst.msk [vmem:[#allocation2] sm:$0xff] %vm19, 0.0
    %21 = vst.msk [vmem:[#allocation2 + $0x8] sm:$0xff] %vm19, 0.0
  $region17: #{decoder_forward.21} parent=0 // pred_fallthru
    _
  %v22 = vld [vmem:[#allocation2] sm:$0xff]
  %v23 = vld [vmem:[#allocation2 + $0x8] sm:$0xff]
  %v24 = vld [vmem:[%s0] sm:$0xf]
  %v25 = vld [vmem:[%s0 + $0x4] sm:$0xf]
  %v26 = vld [vmem:[%s1] sm:$0xf]
  %v27 = vld [vmem:[%s1 + $0x4] sm:$0xf]
  %v28 = vld [vmem:[%s1 + $0x8] sm:$0xf]
  %v29 = vld [vmem:[%s1 + $0xc] sm:$0xf]
  %v32 = vunpack.c.l.b16 %v24
  %v33 = vunpack.c.l.b16 %v25
  %v34 = vpack.c.b16 %v33, %v32
  %v39 = vunpack.c.l.b16 %v26
  %v40 = vunpack.c.l.b16 %v27
  %v41 = vunpack.c.l.b16 %v28
  %v42 = vunpack.c.l.b16 %v29
  %v43 = vpack.c.b16 %v40, %v39
  %v44 = vpack.c.b16 %v42, %v41
  %vm47 = vcmask 261120
  %v49 = vsel %vm47, %v34, 0
  %51 = vmatprep.subr.bf16.mxu0 0
  %52 = vmatpush1.bf16.msra.mxu0 %v43
  %53 = vmatprep.subr.bf16.mxu0 0
  %54 = vmatpush1.bf16.msra.mxu0 %v44
  %55 = vmatprep.subr.bf16.mxu0 0
  %56 = vmatpush1.bf16.msra.mxu0 0
  %57 = vmatprep.subr.bf16.mxu0 0
  %58 = vmatpush1.bf16.msra.mxu0 0
  %59 = vmatprep.subr.bf16.mxu0 0
  %60 = vmatpush1.bf16.msra.mxu0 0
  %61 = vmatprep.subr.bf16.mxu0 0
  %62 = vmatpush1.bf16.msra.mxu0 0
  %63 = vmatprep.subr.bf16.mxu0 0
  %64 = vmatpush1.bf16.msra.mxu0 0
  %65 = vmatprep.subr.bf16.mxu0 0
  %66 = vmatpush1.bf16.msra.mxu0 0
  %67 = vmatprep.subr.bf16.mxu0 0
  %68 = vmatpush1.bf16.msra.mxu0 0
  %69 = vmatprep.subr.bf16.mxu0 0
  %70 = vmatpush1.bf16.msra.mxu0 0
  %71 = vmatprep.subr.bf16.mxu0 0
  %72 = vmatpush1.bf16.msra.mxu0 0
  %73 = vmatprep.subr.bf16.mxu0 0
  %74 = vmatpush1.bf16.msra.mxu0 0
  %75 = vmatprep.subr.bf16.mxu0 0
  %76 = vmatpush1.bf16.msra.mxu0 0
  %77 = vmatprep.subr.bf16.mxu0 0
  %78 = vmatpush1.bf16.msra.mxu0 0
  %79 = vmatprep.subr.bf16.mxu0 0
  %80 = vmatpush1.bf16.msra.mxu0 0
  %81 = vmatprep.subr.bf16.mxu0 0
  %82 = vmatpush1.bf16.msra.mxu0 0
  %83 = vmatprep.mubr.bf16.mxu0 0
  %84 = vmatmul.mubr.bf16.gmra.mrb[0].mxu0 %v49
  %v85 = vpop.f32.mrb[0].mxu0
  %v86 = vadd.f32 0.0, %v85
  %v87 = vpop.f32.mrb[0].mxu0
  %v88 = vpop.f32.mrb[0].mxu0
  %v89 = vadd.f32 0.0, %v88
  %v90 = vpop.f32.mrb[0].mxu0
  %91 = vdwg.mxu0
  %v92 = vadd.f32 %v22, %v86
  %v93 = vadd.f32 %v23, %v89
  %94 = vst.msk [vmem:[#allocation2] sm:$0xff] %vm47, %v92
  %95 = vst.msk [vmem:[#allocation2 + $0x8] sm:$0xff] %vm47, %v93
  // Predicated region
  $region18: #{decoder_forward.21} parent=0 // pred_check
    %p96 = pneg %p15
  $region19: #{decoder_forward.21} parent=0 // pred_check_branch
    %98 = sbr.rel (%p96) target = $region21
  $region20: #{decoder_forward.21} parent=0 // pred_region
    %v99 = vld [vmem:[#allocation2] sm:$0xff]
    %v100 = vld [vmem:[#allocation2 + $0x8] sm:$0xff]
    %v101 = vld [vmem:[%s2] sm:$0x1]
    %v103 = vlaneseq
    %v104 = vshrl.u32 %v103, 7
    %v105 = vsub.s32 0, %v104
    %v106 = vrot.slane %v101, %v105
    %v108 = vadd.f32 %v99, %v106
    %v109 = vadd.f32 %v100, %v106
    %v110 = vpack.c.bf16 %v109, %v108
    %v112 = vunpack.c.l.b16 %v110
    %v113 = vunpack.c.h.b16 %v110
    %v114 = vpack.c.b16 %v112, %v112
    %v115 = vpack.c.b16 %v113, %v113
    %vm118 = vcmask 257024
    %119 = vst.msk [vmem:[%s3] sm:$0xf] %vm118, %v114
    %120 = vst.msk [vmem:[%s3 + $0x4] sm:$0xf] %vm118, %v115
  $region21: #{decoder_forward.21} parent=0 // pred_fallthru
    _
  // Predicated region
  $region22: #{decoder_forward.21} parent=0 // pred_check
    _
  $region23: #{decoder_forward.21} parent=0 // pred_check_branch
    %122 = sbr.rel (0) target = $region25
  $region24: #{decoder_forward.21} parent=0 // pred_region
    _
  $region25: #{decoder_forward.21} parent=0 // pred_fallthru
    _
  // Predicated region
  $region26: #{decoder_forward.21} parent=0 // pred_check
    _
  $region27: #{decoder_forward.21} parent=0 // pred_check_branch
    %124 = sbr.rel (0) target = $region29
  $region28: #{decoder_forward.21} parent=0 // pred_region
    _
  $region29: #{decoder_forward.21} parent=0 // pred_fallthru
    _

// kernel: decoder_forward.18
$region0: #{decoder_forward.18}
  #allocation0 [shape = 'u32[]', space=smem, size = 0x4, offset = 0x4, fixed_abs, tag = 'smem constant byte address 0x4 - core index']
  #allocation1 [shape = 'u32[144,128]{1,0:T(1,128)}', space=vmem, size = 0x12000, scoped, tag = 'internal scratch']
  #allocation2 [shape = 'f32[16,96]{1,0:T(8,128)}', space=vmem, size = 0x2000, scoped, tag = 'scratch operand']
  %s0 = inlined_call_operand.vmem [shape: bf16[16,32], index: 0, kind: input, shape index: {}]
  %s1 = inlined_call_operand.vmem [shape: bf16[32,96], index: 1, kind: input, shape index: {}]
  %s2 = inlined_call_operand.vmem [shape: f32[1,96], index: 2, kind: input, shape index: {}]
  %s3 = inlined_call_operand.vmem [shape: bf16[16,96], index: 3, kind: output, shape index: {}]
  %s4 = sld [smem:[#allocation0]]
  $region30: #{decoder_forward.18} parent=0
    _
  %s6 = ssub.s32 1, %s4
  %s7 = scalar_select 0, %s6, %s4
  // Predicated region
  $region2: #{decoder_forward.18} parent=0 // pred_check
    _
  $region3: #{decoder_forward.18} parent=0 // pred_check_branch
    %9 = sbr.rel (0) target = $region5
  $region4: #{decoder_forward.18} parent=0 // pred_region
    _
  $region5: #{decoder_forward.18} parent=0 // pred_fallthru
    _
  // Predicated region
  $region6: #{decoder_forward.18} parent=0 // pred_check
    _
  $region7: #{decoder_forward.18} parent=0 // pred_check_branch
    %11 = sbr.rel (0) target = $region9
  $region8: #{decoder_forward.18} parent=0 // pred_region
    _
  $region9: #{decoder_forward.18} parent=0 // pred_fallthru
    _
  // Predicated region
  $region10: #{decoder_forward.18} parent=0 // pred_check
    _
  $region11: #{decoder_forward.18} parent=0 // pred_check_branch
    %13 = sbr.rel (0) target = $region13
  $region12: #{decoder_forward.18} parent=0 // pred_region
    _
  $region13: #{decoder_forward.18} parent=0 // pred_fallthru
    _
  %p15 = scmp.eq.s32.totalorder 0, 0
  // Predicated region
  $region14: #{decoder_forward.18} parent=0 // pred_check
    %p16 = pneg %p15
  $region15: #{decoder_forward.18} parent=0 // pred_check_branch
    %18 = sbr.rel (%p16) target = $region17
  $region16: #{decoder_forward.18} parent=0 // pred_region
    %vm19 = vcmask 785408
    %20 = vst.msk [vmem:[#allocation2] sm:$0xff] %vm19, 0.0
    %21 = vst.msk [vmem:[#allocation2 + $0x8] sm:$0xff] %vm19, 0.0
  $region17: #{decoder_forward.18} parent=0 // pred_fallthru
    _
  %v22 = vld [vmem:[#allocation2] sm:$0xff]
  %v23 = vld [vmem:[#allocation2 + $0x8] sm:$0xff]
  %v24 = vld [vmem:[%s0] sm:$0xf]
  %v25 = vld [vmem:[%s0 + $0x4] sm:$0xf]
  %v26 = vld [vmem:[%s1] sm:$0xf]
  %v27 = vld [vmem:[%s1 + $0x4] sm:$0xf]
  %v28 = vld [vmem:[%s1 + $0x8] sm:$0xf]
  %v29 = vld [vmem:[%s1 + $0xc] sm:$0xf]
  %v32 = vunpack.c.l.b16 %v24
  %v33 = vunpack.c.l.b16 %v25
  %v34 = vpack.c.b16 %v33, %v32
  %v39 = vunpack.c.l.b16 %v26
  %v40 = vunpack.c.l.b16 %v27
  %v41 = vunpack.c.l.b16 %v28
  %v42 = vunpack.c.l.b16 %v29
  %v43 = vpack.c.b16 %v40, %v39
  %v44 = vpack.c.b16 %v42, %v41
  %vm47 = vcmask 261120
  %v49 = vsel %vm47, %v34, 0
  %51 = vmatprep.subr.bf16.mxu0 0
  %52 = vmatpush1.bf16.msra.mxu0 %v43
  %53 = vmatprep.subr.bf16.mxu0 0
  %54 = vmatpush1.bf16.msra.mxu0 %v44
  %55 = vmatprep.subr.bf16.mxu0 0
  %56 = vmatpush1.bf16.msra.mxu0 0
  %57 = vmatprep.subr.bf16.mxu0 0
  %58 = vmatpush1.bf16.msra.mxu0 0
  %59 = vmatprep.subr.bf16.mxu0 0
  %60 = vmatpush1.bf16.msra.mxu0 0
  %61 = vmatprep.subr.bf16.mxu0 0
  %62 = vmatpush1.bf16.msra.mxu0 0
  %63 = vmatprep.subr.bf16.mxu0 0
  %64 = vmatpush1.bf16.msra.mxu0 0
  %65 = vmatprep.subr.bf16.mxu0 0
  %66 = vmatpush1.bf16.msra.mxu0 0
  %67 = vmatprep.subr.bf16.mxu0 0
  %68 = vmatpush1.bf16.msra.mxu0 0
  %69 = vmatprep.subr.bf16.mxu0 0
  %70 = vmatpush1.bf16.msra.mxu0 0
  %71 = vmatprep.subr.bf16.mxu0 0
  %72 = vmatpush1.bf16.msra.mxu0 0
  %73 = vmatprep.subr.bf16.mxu0 0
  %74 = vmatpush1.bf16.msra.mxu0 0
  %75 = vmatprep.subr.bf16.mxu0 0
  %76 = vmatpush1.bf16.msra.mxu0 0
  %77 = vmatprep.subr.bf16.mxu0 0
  %78 = vmatpush1.bf16.msra.mxu0 0
  %79 = vmatprep.subr.bf16.mxu0 0
  %80 = vmatpush1.bf16.msra.mxu0 0
  %81 = vmatprep.subr.bf16.mxu0 0
  %82 = vmatpush1.bf16.msra.mxu0 0
  %83 = vmatprep.mubr.bf16.mxu0 0
  %84 = vmatmul.mubr.bf16.gmra.mrb[0].mxu0 %v49
  %v85 = vpop.f32.mrb[0].mxu0
  %v86 = vadd.f32 0.0, %v85
  %v87 = vpop.f32.mrb[0].mxu0
  %v88 = vpop.f32.mrb[0].mxu0
  %v89 = vadd.f32 0.0, %v88
  %v90 = vpop.f32.mrb[0].mxu0
  %91 = vdwg.mxu0
  %v92 = vadd.f32 %v22, %v86
  %v93 = vadd.f32 %v23, %v89
  %vm94 = vcmask 785408
  %95 = vst.msk [vmem:[#allocation2] sm:$0xff] %vm94, %v92
  %96 = vst.msk [vmem:[#allocation2 + $0x8] sm:$0xff] %vm94, %v93
  // Predicated region
  $region18: #{decoder_forward.18} parent=0 // pred_check
    %p97 = pneg %p15
  $region19: #{decoder_forward.18} parent=0 // pred_check_branch
    %99 = sbr.rel (%p97) target = $region21
  $region20: #{decoder_forward.18} parent=0 // pred_region
    %v100 = vld [vmem:[#allocation2] sm:$0xff]
    %v101 = vld [vmem:[#allocation2 + $0x8] sm:$0xff]
    %v102 = vld [vmem:[%s2] sm:$0x1]
    %v104 = vlaneseq
    %v105 = vshrl.u32 %v104, 7
    %v106 = vsub.s32 0, %v105
    %v107 = vrot.slane %v102, %v106
    %v109 = vadd.f32 %v100, %v107
    %v110 = vadd.f32 %v101, %v107
    %v111 = vpack.c.bf16 %v110, %v109
    %v113 = vunpack.c.l.b16 %v111
    %v114 = vunpack.c.h.b16 %v111
    %v115 = vpack.c.b16 %v113, %v113
    %v116 = vpack.c.b16 %v114, %v114
    %vm119 = vcmask 781312
    %120 = vst.msk [vmem:[%s3] sm:$0xf] %vm119, %v115
    %121 = vst.msk [vmem:[%s3 + $0x4] sm:$0xf] %vm119, %v116
  $region21: #{decoder_forward.18} parent=0 // pred_fallthru
    _
  // Predicated region
  $region22: #{decoder_forward.18} parent=0 // pred_check
    _
  $region23: #{decoder_forward.18} parent=0 // pred_check_branch
    %123 = sbr.rel (0) target = $region25
  $region24: #{decoder_forward.18} parent=0 // pred_region
    _
  $region25: #{decoder_forward.18} parent=0 // pred_fallthru
    _
  // Predicated region
  $region26: #{decoder_forward.18} parent=0 // pred_check
    _
  $region27: #{decoder_forward.18} parent=0 // pred_check_branch
    %125 = sbr.rel (0) target = $region29
  $region28: #{decoder_forward.18} parent=0 // pred_region
    _
  $region29: #{decoder_forward.18} parent=0 // pred_fallthru
    _

// kernel: decoder_forward.20
$region0: #{decoder_forward.20}
  #allocation0 [shape = 'u32[]', space=smem, size = 0x4, offset = 0x4, fixed_abs, tag = 'smem constant byte address 0x4 - core index']
  #allocation1 [shape = 'u32[144,128]{1,0:T(1,128)}', space=vmem, size = 0x12000, scoped, tag = 'internal scratch']
  %s0 = inlined_call_operand.vmem [shape: bf16[16,32], index: 0, kind: input, shape index: {}]
  %s1 = inlined_call_operand.vmem [shape: bf16[16,32], index: 1, kind: input, shape index: {}]
  %s2 = inlined_call_operand.vmem [shape: f32[1,32], index: 2, kind: input, shape index: {}]
  %s3 = inlined_call_operand.vmem [shape: f32[1,32], index: 3, kind: input, shape index: {}]
  %s4 = inlined_call_operand.vmem [shape: bf16[16,32], index: 4, kind: output, shape index: {}]
  %s5 = sld [smem:[#allocation0]]
  $region26: #{decoder_forward.20} parent=0
    _
  %s7 = ssub.s32 1, %s5
  %s8 = scalar_select 0, %s7, %s5
  // Predicated region
  $region2: #{decoder_forward.20} parent=0 // pred_check
    _
  $region3: #{decoder_forward.20} parent=0 // pred_check_branch
    %10 = sbr.rel (0) target = $region5
  $region4: #{decoder_forward.20} parent=0 // pred_region
    _
  $region5: #{decoder_forward.20} parent=0 // pred_fallthru
    _
  // Predicated region
  $region6: #{decoder_forward.20} parent=0 // pred_check
    _
  $region7: #{decoder_forward.20} parent=0 // pred_check_branch
    %12 = sbr.rel (0) target = $region9
  $region8: #{decoder_forward.20} parent=0 // pred_region
    _
  $region9: #{decoder_forward.20} parent=0 // pred_fallthru
    _
  // Predicated region
  $region10: #{decoder_forward.20} parent=0 // pred_check
    _
  $region11: #{decoder_forward.20} parent=0 // pred_check_branch
    %14 = sbr.rel (0) target = $region13
  $region12: #{decoder_forward.20} parent=0 // pred_region
    _
  $region13: #{decoder_forward.20} parent=0 // pred_fallthru
    _
  // Predicated region
  $region14: #{decoder_forward.20} parent=0 // pred_check
    _
  $region15: #{decoder_forward.20} parent=0 // pred_check_branch
    %16 = sbr.rel (0) target = $region17
  $region16: #{decoder_forward.20} parent=0 // pred_region
    _
  $region17: #{decoder_forward.20} parent=0 // pred_fallthru
    _
  %v17 = vld [vmem:[%s0] sm:$0xf]
  %v18 = vld [vmem:[%s0 + $0x4] sm:$0xf]
  %v19 = vunpack.c.l.bf16 %v17
  %v20 = vunpack.c.l.bf16 %v18
  %v21 = vld [vmem:[%s1] sm:$0xf]
  %v22 = vld [vmem:[%s1 + $0x4] sm:$0xf]
  %v23 = vunpack.c.l.bf16 %v21
  %v24 = vunpack.c.l.bf16 %v22
  %v25 = vadd.f32 %v19, %v23
  %v26 = vadd.f32 %v20, %v24
  %vm27 = vcmask 261120
  %v28 = vsel %vm27, %v25, 0.0
  %29 = vadd.xlane.f32.xlu0 %v28
  %v30 = vpop.xlane.xlu0 %29
  %v31 = vsel %vm27, %v26, 0.0
  %32 = vadd.xlane.f32.xlu0 %v31
  %v33 = vpop.xlane.xlu0 %32
  %v34 = vrcp.pop 32.0
  %v35 = vmul.f32 %v30, %v34
  %v36 = vmul.f32 %v33, %v34
  %v37 = vsub.f32 %v25, %v35
  %v38 = vsub.f32 %v26, %v36
  %v39 = vmul.f32 %v37, %v37
  %v40 = vmul.f32 %v38, %v38
  %v41 = vsel %vm27, %v39, 0.0
  %42 = vadd.xlane.f32.xlu0 %v41
  %v43 = vpop.xlane.xlu0 %42
  %v44 = vsel %vm27, %v40, 0.0
  %45 = vadd.xlane.f32.xlu0 %v44
  %v46 = vpop.xlane.xlu0 %45
  %v47 = vmul.f32 %v43, %v34
  %v48 = vmul.f32 %v46, %v34
  %v49 = vadd.f32 %v47, 1e-05
  %v50 = vadd.f32 %v48, 1e-05
  %v51 = vrsqrt.pop %v49
  %v52 = vrsqrt.pop %v50
  %v53 = vmul.f32 %v37, %v51
  %v54 = vmul.f32 %v38, %v52
  %v55 = vld [vmem:[%s2] sm:$0x1]
  %v57 = vlaneseq
  %v58 = vshrl.u32 %v57, 7
  %v59 = vsub.s32 0, %v58
  %v60 = vrot.slane %v55, %v59
  %v62 = vmul.f32 %v53, %v60
  %v63 = vmul.f32 %v54, %v60
  %v64 = vld [vmem:[%s3] sm:$0x1]
  %v66 = vlaneseq
  %v67 = vshrl.u32 %v66, 7
  %v68 = vsub.s32 0, %v67
  %v69 = vrot.slane %v64, %v68
  %v71 = vadd.f32 %v62, %v69
  %v72 = vadd.f32 %v63, %v69
  %v73 = vpack.c.bf16 %v72, %v71
  %v75 = vunpack.c.l.b16 %v73
  %v76 = vunpack.c.h.b16 %v73
  %v77 = vpack.c.b16 %v75, %v75
  %v78 = vpack.c.b16 %v76, %v76
  %vm81 = vcmask 257024
  %82 = vst.msk [vmem:[%s4] sm:$0xf] %vm81, %v77
  %83 = vst.msk [vmem:[%s4 + $0x4] sm:$0xf] %vm81, %v78
  // Predicated region
  $region18: #{decoder_forward.20} parent=0 // pred_check
    _
  $region19: #{decoder_forward.20} parent=0 // pred_check_branch
    %85 = sbr.rel (0) target = $region21
  $region20: #{decoder_forward.20} parent=0 // pred_region
    _
  $region21: #{decoder_forward.20} parent=0 // pred_fallthru
    _
  // Predicated region
  $region22: #{decoder_forward.20} parent=0 // pred_check
    _
  $region23: #{decoder_forward.20} parent=0 // pred_check_branch
    %87 = sbr.rel (0) target = $region25
  $region24: #{decoder_forward.20} parent=0 // pred_region
    _
  $region25: #{decoder_forward.20} parent=0 // pred_fallthru
    _

// kernel: decoder_forward.19
$region0: #{decoder_forward.19}
  #allocation0 [shape = 'u32[]', space=smem, size = 0x4, offset = 0x4, fixed_abs, tag = 'smem constant byte address 0x4 - core index']
  #allocation1 [shape = 'u32[144,128]{1,0:T(1,128)}', space=vmem, size = 0x12000, scoped, tag = 'internal scratch']
  %s0 = inlined_call_operand.vmem [shape: bf16[2,8,32], index: 0, kind: input, shape index: {}]
  %s1 = inlined_call_operand.vmem [shape: bf16[2,8,32], index: 1, kind: input, shape index: {}]
  %s2 = inlined_call_operand.vmem [shape: bf16[2,8,32], index: 2, kind: input, shape index: {}]
  %s3 = inlined_call_operand.vmem [shape: f32[1,8,8], index: 3, kind: input, shape index: {}]
  %s4 = inlined_call_operand.vmem [shape: bf16[32,32], index: 4, kind: input, shape index: {}]
  %s5 = inlined_call_operand.vmem [shape: f32[1,32], index: 5, kind: input, shape index: {}]
  %s6 = inlined_call_operand.vmem [shape: bf16[2,8,32], index: 6, kind: output, shape index: {}]
  %s7 = sld [smem:[#allocation0]]
  $region57: #{decoder_forward.19} parent=0
    _
  %s9 = ssub.s32 1, %s7
  %s10 = scalar_select 0, %s9, %s7
  loop: start=0, step=1, limit=4
  $region2: #{decoder_forward.19} parent=0 // loop_pre_header
    _
  $region3: #{decoder_forward.19} parent=0 // loop_header
    %s12 = sphi 0, %s16
    %p13 = scmp.ge.s32.totalorder %s12, 4
    %s22 = sphi 0, %s24
    %s25 = sphi 0, %s22
    %s26 = sphi 0, %s25
    %s42 = sphi 0, %s26
    %s48 = sphi 0, %s50
    %s51 = sphi 0, %s48
    %s52 = sphi 0, %s51
    %s68 = sphi 0, %s52
    %s74 = sphi 0, %s76
    %s77 = sphi 0, %s74
    %s78 = sphi 0, %s77
    %s94 = sphi 0, %s78
    %s98 = sphi 0, %s98
    %s100 = sphi 0, %s98
    %s101 = sphi 0, %s100
    %s115 = sphi 0, %s101
    %s119 = sphi 0, %s119
    %s121 = sphi 0, %s119
    %s122 = sphi 0, %s121
    %s136 = sphi 0, %s122
    %s140 = sphi 0, %s140
    %s142 = sphi 0, %s140
    %s143 = sphi 0, %s142
    %s157 = sphi 0, %s143
    %s163 = sphi 0, %s165
    %s166 = sphi 0, %s163
    %s167 = sphi 0, %s166
    %s183 = sphi 0, %s167
  $region4: #{decoder_forward.19} parent=0 // loop_header_branch
    %15 = sbr.rel (%p13) target = $region8
  $region5: #{decoder_forward.19} parent=0 // loop_body
    %s17 = ssub.s32 %s12, 1
    %s18 = ssub.s32 %s12, 2
    %s19 = sadd.s32 %s12, 1
    %s20 = ssub.s32 %s12, %s19
    %p21 = scmp.eq.s32.totalorder %s20, 0
    %s23 = sadd.s32 %s22, 1
    %s24 = scalar_select %p21, %s22, %s23
    %p27 = pneg %p21
    %p28 = scmp.eq.s32.totalorder %s12, 1
    %p29 = por %p27, %p28
    %p30 = scmp.ne.s32.totalorder %s22, %s25
    %p31 = scmp.eq.s32.totalorder %s12, 0
    %p32 = por %p30, %p31
    %p33 = scmp.ne.s32.totalorder %s22, %s25
    %p34 = scmp.eq.s32.totalorder %s17, 1
    %p35 = por %p33, %p34
    %p36 = scmp.ne.s32.totalorder %s25, %s26
    %p37 = scmp.eq.s32.totalorder %s17, 0
    %p38 = por %p36, %p37
    %p39 = scmp.ne.s32.totalorder %s25, %s26
    %p40 = scmp.eq.s32.totalorder %s18, 1
    %p41 = por %p39, %p40
    %p43 = scmp.ne.s32.totalorder %s26, %s42
    %p44 = scmp.eq.s32.totalorder %s18, 0
    %p45 = por %p43, %p44
    %s46 = ssub.s32 %s12, %s19
    %p47 = scmp.eq.s32.totalorder %s46, 0
    %s49 = sadd.s32 %s48, 1
    %s50 = scalar_select %p47, %s48, %s49
    %p53 = pneg %p47
    %p54 = scmp.eq.s32.totalorder %s12, 1
    %p55 = por %p53, %p54
    %p56 = scmp.ne.s32.totalorder %s48, %s51
    %p57 = scmp.eq.s32.totalorder %s12, 0
    %p58 = por %p56, %p57
    %p59 = scmp.ne.s32.totalorder %s48, %s51
    %p60 = scmp.eq.s32.totalorder %s17, 1
    %p61 = por %p59, %p60
    %p62 = scmp.ne.s32.totalorder %s51, %s52
    %p63 = scmp.eq.s32.totalorder %s17, 0
    %p64 = por %p62, %p63
    %p65 = scmp.ne.s32.totalorder %s51, %s52
    %p66 = scmp.eq.s32.totalorder %s18, 1
    %p67 = por %p65, %p66
    %p69 = scmp.ne.s32.totalorder %s52, %s68
    %p70 = scmp.eq.s32.totalorder %s18, 0
    %p71 = por %p69, %p70
    %s72 = ssub.s32 %s12, %s19
    %p73 = scmp.eq.s32.totalorder %s72, 0
    %s75 = sadd.s32 %s74, 1
    %s76 = scalar_select %p73, %s74, %s75
    %p79 = pneg %p73
    %p80 = scmp.eq.s32.totalorder %s12, 1
    %p81 = por %p79, %p80
    %p82 = scmp.ne.s32.totalorder %s74, %s77
    %p83 = scmp.eq.s32.totalorder %s12, 0
    %p84 = por %p82, %p83
    %p85 = scmp.ne.s32.totalorder %s74, %s77
    %p86 = scmp.eq.s32.totalorder %s17, 1
    %p87 = por %p85, %p86
    %p88 = scmp.ne.s32.totalorder %s77, %s78
    %p89 = scmp.eq.s32.totalorder %s17, 0
    %p90 = por %p88, %p89
    %p91 = scmp.ne.s32.totalorder %s77, %s78
    %p92 = scmp.eq.s32.totalorder %s18, 1
    %p93 = por %p91, %p92
    %p95 = scmp.ne.s32.totalorder %s78, %s94
    %p96 = scmp.eq.s32.totalorder %s18, 0
    %p97 = por %p95, %p96
    %s99 = sadd.s32 %s98, 1
    %p102 = scmp.eq.s32.totalorder %s12, 1
    %p103 = scmp.ne.s32.totalorder %s98, %s100
    %p104 = scmp.eq.s32.totalorder %s12, 0
    %p105 = por %p103, %p104
    %p106 = scmp.ne.s32.totalorder %s98, %s100
    %p107 = scmp.eq.s32.totalorder %s17, 1
    %p108 = por %p106, %p107
    %p109 = scmp.ne.s32.totalorder %s100, %s101
    %p110 = scmp.eq.s32.totalorder %s17, 0
    %p111 = por %p109, %p110
    %p112 = scmp.ne.s32.totalorder %s100, %s101
    %p113 = scmp.eq.s32.totalorder %s18, 1
    %p114 = por %p112, %p113
    %p116 = scmp.ne.s32.totalorder %s101, %s115
    %p117 = scmp.eq.s32.totalorder %s18, 0
    %p118 = por %p116, %p117
    %s120 = sadd.s32 %s119, 1
    %p123 = scmp.eq.s32.totalorder %s12, 1
    %p124 = scmp.ne.s32.totalorder %s119, %s121
    %p125 = scmp.eq.s32.totalorder %s12, 0
    %p126 = por %p124, %p125
    %p127 = scmp.ne.s32.totalorder %s119, %s121
    %p128 = scmp.eq.s32.totalorder %s17, 1
    %p129 = por %p127, %p128
    %p130 = scmp.ne.s32.totalorder %s121, %s122
    %p131 = scmp.eq.s32.totalorder %s17, 0
    %p132 = por %p130, %p131
    %p133 = scmp.ne.s32.totalorder %s121, %s122
    %p134 = scmp.eq.s32.totalorder %s18, 1
    %p135 = por %p133, %p134
    %p137 = scmp.ne.s32.totalorder %s122, %s136
    %p138 = scmp.eq.s32.totalorder %s18, 0
    %p139 = por %p137, %p138
    %s141 = sadd.s32 %s140, 1
    %p144 = scmp.eq.s32.totalorder %s12, 1
    %p145 = scmp.ne.s32.totalorder %s140, %s142
    %p146 = scmp.eq.s32.totalorder %s12, 0
    %p147 = por %p145, %p146
    %p148 = scmp.ne.s32.totalorder %s140, %s142
    %p149 = scmp.eq.s32.totalorder %s17, 1
    %p150 = por %p148, %p149
    %p151 = scmp.ne.s32.totalorder %s142, %s143
    %p152 = scmp.eq.s32.totalorder %s17, 0
    %p153 = por %p151, %p152
    %p154 = scmp.ne.s32.totalorder %s142, %s143
    %p155 = scmp.eq.s32.totalorder %s18, 1
    %p156 = por %p154, %p155
    %p158 = scmp.ne.s32.totalorder %s143, %s157
    %p159 = scmp.eq.s32.totalorder %s18, 0
    %p160 = por %p158, %p159
    %s161 = ssub.s32 %s12, %s19
    %p162 = scmp.eq.s32.totalorder %s161, 0
    %s164 = sadd.s32 %s163, 1
    %s165 = scalar_select %p162, %s163, %s164
    %p168 = pneg %p162
    %p169 = scmp.eq.s32.totalorder %s12, 1
    %p170 = por %p168, %p169
    %p171 = scmp.ne.s32.totalorder %s163, %s166
    %p172 = scmp.eq.s32.totalorder %s12, 0
    %p173 = por %p171, %p172
    %p174 = scmp.ne.s32.totalorder %s163, %s166
    %p175 = scmp.eq.s32.totalorder %s17, 1
    %p176 = por %p174, %p175
    %p177 = scmp.ne.s32.totalorder %s166, %s167
    %p178 = scmp.eq.s32.totalorder %s17, 0
    %p179 = por %p177, %p178
    %p180 = scmp.ne.s32.totalorder %s166, %s167
    %p181 = scmp.eq.s32.totalorder %s18, 1
    %p182 = por %p180, %p181
    %p184 = scmp.ne.s32.totalorder %s167, %s183
    %p185 = scmp.eq.s32.totalorder %s18, 0
    %p186 = por %p184, %p185
    %p187 = scmp.le.s32.totalorder 1, %s12
    %p188 = scmp.lt.s32.totalorder %s12, 3
    %p189 = pnand %p187, %p188
    %p190 = pneg %p189
    // Predicated region
    $region9: #{decoder_forward.19} parent=5 // pred_check
      _
    $region10: #{decoder_forward.19} parent=5 // pred_check_branch
      %192 = sbr.rel (%p189) target = $region12
    $region11: #{decoder_forward.19} parent=5 // pred_region
      %s193 = ssub.s32 %s12, 1
      // Predicated region
      $region13: #{decoder_forward.19} parent=11 // pred_check
        %p194 = pneg %p111
      $region14: #{decoder_forward.19} parent=11 // pred_check_branch
        %196 = sbr.rel (%p194) target = $region16
      $region15: #{decoder_forward.19} parent=11 // pred_region
        _
      $region16: #{decoder_forward.19} parent=11 // pred_fallthru
        _
      // Predicated region
      $region17: #{decoder_forward.19} parent=11 // pred_check
        %p197 = pneg %p132
      $region18: #{decoder_forward.19} parent=11 // pred_check_branch
        %199 = sbr.rel (%p197) target = $region20
      $region19: #{decoder_forward.19} parent=11 // pred_region
        _
      $region20: #{decoder_forward.19} parent=11 // pred_fallthru
        _
      // Predicated region
      $region21: #{decoder_forward.19} parent=11 // pred_check
        %p200 = pneg %p153
      $region22: #{decoder_forward.19} parent=11 // pred_check_branch
        %202 = sbr.rel (%p200) target = $region24
      $region23: #{decoder_forward.19} parent=11 // pred_region
        _
      $region24: #{decoder_forward.19} parent=11 // pred_fallthru
        _
    $region12: #{decoder_forward.19} parent=5 // pred_fallthru
      _
    %p203 = scmp.lt.s32.totalorder %s12, 2
    // Predicated region
    $region25: #{decoder_forward.19} parent=5 // pred_check
      %p204 = pneg %p203
    $region26: #{decoder_forward.19} parent=5 // pred_check_branch
      %206 = sbr.rel (%p204) target = $region28
    $region27: #{decoder_forward.19} parent=5 // pred_region
      // Predicated region
      $region29: #{decoder_forward.19} parent=27 // pred_check
        %p207 = pneg %p32
      $region30: #{decoder_forward.19} parent=27 // pred_check_branch
        %209 = sbr.rel (%p207) target = $region32
      $region31: #{decoder_forward.19} parent=27 // pred_region
        %p210 = scmp.lt.s32.totalorder %s12, 1
        %s211 = scalar_select %p210, %s12, 1
        %s212 = smul.addr %s211, 4
        %s213 = scalar_lea.vmem %s0, %s212
      $region32: #{decoder_forward.19} parent=27 // pred_fallthru
        _
      // Predicated region
      $region33: #{decoder_forward.19} parent=27 // pred_check
        %p214 = pneg %p58
      $region34: #{decoder_forward.19} parent=27 // pred_check_branch
        %216 = sbr.rel (%p214) target = $region36
      $region35: #{decoder_forward.19} parent=27 // pred_region
        %p217 = scmp.lt.s32.totalorder %s12, 1
        %s218 = scalar_select %p217, %s12, 1
        %s219 = smul.addr %s218, 4
        %s220 = scalar_lea.vmem %s1, %s219
      $region36: #{decoder_forward.19} parent=27 // pred_fallthru
        _
      // Predicated region
      $region37: #{decoder_forward.19} parent=27 // pred_check
        %p221 = pneg %p84
      $region38: #{decoder_forward.19} parent=27 // pred_check_branch
        %223 = sbr.rel (%p221) target = $region40
      $region39: #{decoder_forward.19} parent=27 // pred_region
        %p224 = scmp.lt.s32.totalorder %s12, 1
        %s225 = scalar_select %p224, %s12, 1
        %s226 = smul.addr %s225, 4
        %s227 = scalar_lea.vmem %s2, %s226
      $region40: #{decoder_forward.19} parent=27 // pred_fallthru
        _
    $region28: #{decoder_forward.19} parent=5 // pred_fallthru
      _
    %p228 = scmp.le.s32.totalorder 1, %s12
    %p229 = scmp.lt.s32.totalorder %s12, 3
    %p230 = pnand %p228, %p229
    %p231 = pneg %p230
    // Predicated region
    $region41: #{decoder_forward.19} parent=5 // pred_check
      _
    $region42: #{decoder_forward.19} parent=5 // pred_check_branch
      %233 = sbr.rel (%p230) target = $region44
    $region43: #{decoder_forward.19} parent=5 // pred_region
      %s234 = ssub.s32 %s12, 1
      %p235 = scmp.lt.s32.totalorder %s17, 1
      %s236 = scalar_select %p235, %s17, 1
      %s237 = smul.addr %s236, 4
      %s238 = scalar_lea.vmem %s0, %s237
      %p239 = pneg %p38
      %p240 = pneg %p35
      %p241 = scmp.lt.s32.totalorder %s17, 1
      %s242 = scalar_select %p241, %s17, 1
      %s243 = smul.addr %s242, 4
      %s244 = scalar_lea.vmem %s1, %s243
      %p245 = pneg %p64
      %p246 = pneg %p61
      %p247 = scmp.lt.s32.totalorder %s17, 1
      %s248 = scalar_select %p247, %s17, 1
      %s249 = smul.addr %s248, 4
      %s250 = scalar_lea.vmem %s2, %s249
      %p251 = pneg %p90
      %p252 = pneg %p87
      %p253 = pneg %p111
      %p254 = pneg %p108
      %p255 = pneg %p132
      %p256 = pneg %p129
      %p257 = pneg %p153
      %p258 = pneg %p150
      %p259 = pneg %p179
      %p260 = pneg %p176
      %p261 = scmp.lt.s32.totalorder %s17, 1
      %s262 = scalar_select %p261, %s17, 1
      %s263 = smul.addr %s262, 4
      %s264 = scalar_lea.vmem %s6, %s263
      %p265 = scmp.lt.s32.totalorder %s17, 1
      %s266 = scalar_select %p265, %s17, 1
      %s267 = smul.addr %s266, 4
      %s268 = scalar_lea.vmem %s0, %s267
      %p269 = scmp.lt.s32.totalorder %s17, 1
      %s270 = scalar_select %p269, %s17, 1
      %s271 = smul.addr %s270, 4
      %s272 = scalar_lea.vmem %s1, %s271
      %p273 = scmp.lt.s32.totalorder %s17, 1
      %s274 = scalar_select %p273, %s17, 1
      %s275 = smul.addr %s274, 4
      %s276 = scalar_lea.vmem %s2, %s275
      %p277 = scmp.lt.s32.totalorder %s17, 1
      %s278 = scalar_select %p277, %s17, 1
      %s279 = smul.addr %s278, 4
      %s280 = scalar_lea.vmem %s6, %s279
      %v282 = vld [vmem:[%s268] sm:$0xf]
      %v283 = vld [vmem:[%s272] sm:$0xf]
      %v284 = vld [vmem:[%s276] sm:$0xf]
      %v285 = vld [vmem:[%s3] sm:$0xff]
      %vm286 = vcmask 64512
      %v288 = vsel %vm286, %v282, 0
      %v291 = vsel %vm286, %v283, 0
      %293 = vmatprep.subr.bf16.mxu0 0
      %294 = vmatpush1.bf16.xpose.msra.mxu0 %v291
      %295 = vmatprep.subr.bf16.mxu0 0
      %296 = vmatpush1.bf16.xpose.msra.mxu0 0
      %297 = vmatprep.subr.bf16.mxu0 0
      %298 = vmatpush1.bf16.xpose.msra.mxu0 0
      %299 = vmatprep.subr.bf16.mxu0 0
      %300 = vmatpush1.bf16.xpose.msra.mxu0 0
      %301 = vmatprep.subr.bf16.mxu0 0
      %302 = vmatpush1.bf16.xpose.msra.mxu0 0
      %303 = vmatprep.subr.bf16.mxu0 0
      %304 = vmatpush1.bf16.xpose.msra.mxu0 0
      %305 = vmatprep.subr.bf16.mxu0 0
      %306 = vmatpush1.bf16.xpose.msra.mxu0 0
      %307 = vmatprep.subr.bf16.mxu0 0
      %308 = vmatpush1.bf16.xpose.msra.mxu0 0
      %309 = vmatprep.subr.bf16.mxu0 0
      %310 = vmatpush1.bf16.xpose.msra.mxu0 0
      %311 = vmatprep.subr.bf16.mxu0 0
      %312 = vmatpush1.bf16.xpose.msra.mxu0 0
      %313 = vmatprep.subr.bf16.mxu0 0
      %314 = vmatpush1.bf16.xpose.msra.mxu0 0
      %315 = vmatprep.subr.bf16.mxu0 0
      %316 = vmatpush1.bf16.xpose.msra.mxu0 0
      %317 = vmatprep.subr.bf16.mxu0 0
      %318 = vmatpush1.bf16.xpose.msra.mxu0 0
      %319 = vmatprep.subr.bf16.mxu0 0
      %320 = vmatpush1.bf16.xpose.msra.mxu0 0
      %321 = vmatprep.subr.bf16.mxu0 0
      %322 = vmatpush1.bf16.xpose.msra.mxu0 0
      %323 = vmatprep.subr.bf16.mxu0 0
      %324 = vmatpush1.bf16.xpose.msra.mxu0 0
      %325 = vmatprep.mubr.bf16.mxu0 0
      %326 = vmatmul.mubr.bf16.gmra.mrb[0].mxu0 %v288
      %v327 = vpop.f32.mrb[0].mxu0
      %v328 = vadd.f32 0.0, %v327
      %v329 = vpop.f32.mrb[0].mxu0
      %v330 = vpop.f32.mrb[0].mxu0
      %v331 = vpop.f32.mrb[0].mxu0
      %332 = vdwg.mxu0
      %v333 = vmul.f32 %v328, 0.35355338
      %v334 = vadd.f32 %v333, %v285
      %v335 = vsel %vm286, %v334, -inf
      %336 = vmax.xlane.f32.xlu0 %v335
      %v337 = vpop.xlane.xlu0 %336
      %v338 = vsub.f32 %v334, %v337
      %v339 = vmul.f32 %v338, 1.442695
      %v340 = vpow.pop %v339
      %v341 = vsel %vm286, %v340, 0.0
      %342 = vadd.xlane.f32.xlu0 %v341
      %v343 = vpop.xlane.xlu0 %342
      %v344 = vrcp.pop %v343
      %v345 = vmul.f32 %v340, %v344
      %v346 = vpack.c.bf16 %v345, %v345
      %v348 = vsel %vm286, %v346, 0
      %vm350 = vcmask 1043456
      %v352 = vsel %vm350, %v284, 0
      %354 = vmatprep.subr.bf16.mxu0 0
      %355 = vmatpush1.bf16.msra.mxu0 %v352
      %356 = vmatprep.subr.bf16.mxu0 0
      %357 = vmatpush1.bf16.msra.mxu0 0
      %358 = vmatprep.subr.bf16.mxu0 0
      %359 = vmatpush1.bf16.msra.mxu0 0
      %360 = vmatprep.subr.bf16.mxu0 0
      %361 = vmatpush1.bf16.msra.mxu0 0
      %362 = vmatprep.subr.bf16.mxu0 0
      %363 = vmatpush1.bf16.msra.mxu0 0
      %364 = vmatprep.subr.bf16.mxu0 0
      %365 = vmatpush1.bf16.msra.mxu0 0
      %366 = vmatprep.subr.bf16.mxu0 0
      %367 = vmatpush1.bf16.msra.mxu0 0
      %368 = vmatprep.subr.bf16.mxu0 0
      %369 = vmatpush1.bf16.msra.mxu0 0
      %370 = vmatprep.subr.bf16.mxu0 0
      %371 = vmatpush1.bf16.msra.mxu0 0
      %372 = vmatprep.subr.bf16.mxu0 0
      %373 = vmatpush1.bf16.msra.mxu0 0
      %374 = vmatprep.subr.bf16.mxu0 0
      %375 = vmatpush1.bf16.msra.mxu0 0
      %376 = vmatprep.subr.bf16.mxu0 0
      %377 = vmatpush1.bf16.msra.mxu0 0
      %378 = vmatprep.subr.bf16.mxu0 0
      %379 = vmatpush1.bf16.msra.mxu0 0
      %380 = vmatprep.subr.bf16.mxu0 0
      %381 = vmatpush1.bf16.msra.mxu0 0
      %382 = vmatprep.subr.bf16.mxu0 0
      %383 = vmatpush1.bf16.msra.mxu0 0
      %384 = vmatprep.subr.bf16.mxu0 0
      %385 = vmatpush1.bf16.msra.mxu0 0
      %386 = vmatprep.mubr.bf16.mxu0 0
      %387 = vmatmul.mubr.bf16.gmra.mrb[0].mxu0 %v348
      %v388 = vpop.f32.mrb[0].mxu0
      %v389 = vadd.f32 0.0, %v388
      %v390 = vpop.f32.mrb[0].mxu0
      %v391 = vpop.f32.mrb[0].mxu0
      %v392 = vpop.f32.mrb[0].mxu0
      %393 = vdwg.mxu0
      %v395 = vunpack.c.l.b16 %v282
      %v396 = vpack.c.b16 %v395, %v395
      %397 = vrot.lane.b32.xlu0 %v396, 120
      %v398 = vpop.permute.xlu0 %397
      %v400 = vunpack.c.l.b16 %v283
      %v401 = vpack.c.b16 %v400, %v400
      %402 = vrot.lane.b32.xlu0 %v401, 120
      %v403 = vpop.permute.xlu0 %402
      %v405 = vsel %vm286, %v398, 0
      %v408 = vsel %vm286, %v403, 0
      %410 = vmatprep.subr.bf16.mxu0 0
      %411 = vmatpush1.bf16.xpose.msra.mxu0 %v408
      %412 = vmatprep.subr.bf16.mxu0 0
      %413 = vmatpush1.bf16.xpose.msra.mxu0 0
      %414 = vmatprep.subr.bf16.mxu0 0
      %415 = vmatpush1.bf16.xpose.msra.mxu0 0
      %416 = vmatprep.subr.bf16.mxu0 0
      %417 = vmatpush1.bf16.xpose.msra.mxu0 0
      %418 = vmatprep.subr.bf16.mxu0 0
      %419 = vmatpush1.bf16.xpose.msra.mxu0 0
      %420 = vmatprep.subr.bf16.mxu0 0
      %421 = vmatpush1.bf16.xpose.msra.mxu0 0
      %422 = vmatprep.subr.bf16.mxu0 0
      %423 = vmatpush1.bf16.xpose.msra.mxu0 0
      %424 = vmatprep.subr.bf16.mxu0 0
      %425 = vmatpush1.bf16.xpose.msra.mxu0 0
      %426 = vmatprep.subr.bf16.mxu0 0
      %427 = vmatpush1.bf16.xpose.msra.mxu0 0
      %428 = vmatprep.subr.bf16.mxu0 0
      %429 = vmatpush1.bf16.xpose.msra.mxu0 0
      %430 = vmatprep.subr.bf16.mxu0 0
      %431 = vmatpush1.bf16.xpose.msra.mxu0 0
      %432 = vmatprep.subr.bf16.mxu0 0
      %433 = vmatpush1.bf16.xpose.msra.mxu0 0
      %434 = vmatprep.subr.bf16.mxu0 0
      %435 = vmatpush1.bf16.xpose.msra.mxu0 0
      %436 = vmatprep.subr.bf16.mxu0 0
      %437 = vmatpush1.bf16.xpose.msra.mxu0 0
      %438 = vmatprep.subr.bf16.mxu0 0
      %439 = vmatpush1.bf16.xpose.msra.mxu0 0
      %440 = vmatprep.subr.bf16.mxu0 0
      %441 = vmatpush1.bf16.xpose.msra.mxu0 0
      %442 = vmatprep.mubr.bf16.mxu0 0
      %443 = vmatmul.mubr.bf16.gmra.mrb[0].mxu0 %v405
      %v444 = vpop.f32.mrb[0].mxu0
      %v445 = vadd.f32 0.0, %v444
      %v446 = vpop.f32.mrb[0].mxu0
      %v447 = vpop.f32.mrb[0].mxu0
      %v448 = vpop.f32.mrb[0].mxu0
      %449 = vdwg.mxu0
      %v450 = vmul.f32 %v445, 0.35355338
      %v451 = vadd.f32 %v450, %v285
      %v452 = vsel %vm286, %v451, -inf
      %453 = vmax.xlane.f32.xlu0 %v452
      %v454 = vpop.xlane.xlu0 %453
      %v455 = vsub.f32 %v451, %v454
      %v456 = vmul.f32 %v455, 1.442695
      %v457 = vpow.pop %v456
      %v458 = vsel %vm286, %v457, 0.0
      %459 = vadd.xlane.f32.xlu0 %v458
      %v460 = vpop.xlane.xlu0 %459
      %v461 = vrcp.pop %v460
      %v462 = vmul.f32 %v457, %v461
      %v463 = vpack.c.bf16 %v462, %v462
      %v465 = vunpack.c.l.b16 %v284
      %v466 = vpack.c.b16 %v465, %v465
      %467 = vrot.lane.b32.xlu0 %v466, 120
      %v468 = vpop.permute.xlu0 %467
      %v470 = vsel %vm286, %v463, 0
      %v473 = vsel %vm350, %v468, 0
      %475 = vmatprep.subr.bf16.mxu0 0
      %476 = vmatpush1.bf16.msra.mxu0 %v473
      %477 = vmatprep.subr.bf16.mxu0 0
      %478 = vmatpush1.bf16.msra.mxu0 0
      %479 = vmatprep.subr.bf16.mxu0 0
      %480 = vmatpush1.bf16.msra.mxu0 0
      %481 = vmatprep.subr.bf16.mxu0 0
      %482 = vmatpush1.bf16.msra.mxu0 0
      %483 = vmatprep.subr.bf16.mxu0 0
      %484 = vmatpush1.bf16.msra.mxu0 0
      %485 = vmatprep.subr.bf16.mxu0 0
      %486 = vmatpush1.bf16.msra.mxu0 0
      %487 = vmatprep.subr.bf16.mxu0 0
      %488 = vmatpush1.bf16.msra.mxu0 0
      %489 = vmatprep.subr.bf16.mxu0 0
      %490 = vmatpush1.bf16.msra.mxu0 0
      %491 = vmatprep.subr.bf16.mxu0 0
      %492 = vmatpush1.bf16.msra.mxu0 0
      %493 = vmatprep.subr.bf16.mxu0 0
      %494 = vmatpush1.bf16.msra.mxu0 0
      %495 = vmatprep.subr.bf16.mxu0 0
      %496 = vmatpush1.bf16.msra.mxu0 0
      %497 = vmatprep.subr.bf16.mxu0 0
      %498 = vmatpush1.bf16.msra.mxu0 0
      %499 = vmatprep.subr.bf16.mxu0 0
      %500 = vmatpush1.bf16.msra.mxu0 0
      %501 = vmatprep.subr.bf16.mxu0 0
      %502 = vmatpush1.bf16.msra.mxu0 0
      %503 = vmatprep.subr.bf16.mxu0 0
      %504 = vmatpush1.bf16.msra.mxu0 0
      %505 = vmatprep.subr.bf16.mxu0 0
      %506 = vmatpush1.bf16.msra.mxu0 0
      %507 = vmatprep.mubr.bf16.mxu0 0
      %508 = vmatmul.mubr.bf16.gmra.mrb[0].mxu0 %v470
      %v509 = vpop.f32.mrb[0].mxu0
      %v510 = vadd.f32 0.0, %v509
      %v511 = vpop.f32.mrb[0].mxu0
      %v512 = vpop.f32.mrb[0].mxu0
      %v513 = vpop.f32.mrb[0].mxu0
      %514 = vdwg.mxu0
      %515 = vrot.lane.b32.xlu0 %v396, 112
      %v516 = vpop.permute.xlu0 %515
      %517 = vrot.lane.b32.xlu0 %v401, 112
      %v518 = vpop.permute.xlu0 %517
      %v520 = vsel %vm286, %v516, 0
      %v523 = vsel %vm286, %v518, 0
      %525 = vmatprep.subr.bf16.mxu0 0
      %526 = vmatpush1.bf16.xpose.msra.mxu0 %v523
      %527 = vmatprep.subr.bf16.mxu0 0
      %528 = vmatpush1.bf16.xpose.msra.mxu0 0
      %529 = vmatprep.subr.bf16.mxu0 0
      %530 = vmatpush1.bf16.xpose.msra.mxu0 0
      %531 = vmatprep.subr.bf16.mxu0 0
      %532 = vmatpush1.bf16.xpose.msra.mxu0 0
      %533 = vmatprep.subr.bf16.mxu0 0
      %534 = vmatpush1.bf16.xpose.msra.mxu0 0
      %535 = vmatprep.subr.bf16.mxu0 0
      %536 = vmatpush1.bf16.xpose.msra.mxu0 0
      %537 = vmatprep.subr.bf16.mxu0 0
      %538 = vmatpush1.bf16.xpose.msra.mxu0 0
      %539 = vmatprep.subr.bf16.mxu0 0
      %540 = vmatpush1.bf16.xpose.msra.mxu0 0
      %541 = vmatprep.subr.bf16.mxu0 0
      %542 = vmatpush1.bf16.xpose.msra.mxu0 0
      %543 = vmatprep.subr.bf16.mxu0 0
      %544 = vmatpush1.bf16.xpose.msra.mxu0 0
      %545 = vmatprep.subr.bf16.mxu0 0
      %546 = vmatpush1.bf16.xpose.msra.mxu0 0
      %547 = vmatprep.subr.bf16.mxu0 0
      %548 = vmatpush1.bf16.xpose.msra.mxu0 0
      %549 = vmatprep.subr.bf16.mxu0 0
      %550 = vmatpush1.bf16.xpose.msra.mxu0 0
      %551 = vmatprep.subr.bf16.mxu0 0
      %552 = vmatpush1.bf16.xpose.msra.mxu0 0
      %553 = vmatprep.subr.bf16.mxu0 0
      %554 = vmatpush1.bf16.xpose.msra.mxu0 0
      %555 = vmatprep.subr.bf16.mxu0 0
      %556 = vmatpush1.bf16.xpose.msra.mxu0 0
      %557 = vmatprep.mubr.bf16.mxu0 0
      %558 = vmatmul.mubr.bf16.gmra.mrb[0].mxu0 %v520
      %v559 = vpop.f32.mrb[0].mxu0
      %v560 = vadd.f32 0.0, %v559
      %v561 = vpop.f32.mrb[0].mxu0
      %v562 = vpop.f32.mrb[0].mxu0
      %v563 = vpop.f32.mrb[0].mxu0
      %564 = vdwg.mxu0
      %v565 = vmul.f32 %v560, 0.35355338
      %v566 = vadd.f32 %v565, %v285
      %v567 = vsel %vm286, %v566, -inf
      %568 = vmax.xlane.f32.xlu0 %v567
      %v569 = vpop.xlane.xlu0 %568
      %v570 = vsub.f32 %v566, %v569
      %v571 = vmul.f32 %v570, 1.442695
      %v572 = vpow.pop %v571
      %v573 = vsel %vm286, %v572, 0.0
      %574 = vadd.xlane.f32.xlu0 %v573
      %v575 = vpop.xlane.xlu0 %574
      %v576 = vrcp.pop %v575
      %v577 = vmul.f32 %v572, %v576
      %v578 = vpack.c.bf16 %v577, %v577
      %579 = vrot.lane.b32.xlu0 %v466, 112
      %v580 = vpop.permute.xlu0 %579
      %v582 = vsel %vm286, %v578, 0
      %v585 = vsel %vm350, %v580, 0
      %587 = vmatprep.subr.bf16.mxu0 0
      %588 = vmatpush1.bf16.msra.mxu0 %v585
      %589 = vmatprep.subr.bf16.mxu0 0
      %590 = vmatpush1.bf16.msra.mxu0 0
      %591 = vmatprep.subr.bf16.mxu0 0
      %592 = vmatpush1.bf16.msra.mxu0 0
      %593 = vmatprep.subr.bf16.mxu0 0
      %594 = vmatpush1.bf16.msra.mxu0 0
      %595 = vmatprep.subr.bf16.mxu0 0
      %596 = vmatpush1.bf16.msra.mxu0 0
      %597 = vmatprep.subr.bf16.mxu0 0
      %598 = vmatpush1.bf16.msra.mxu0 0
      %599 = vmatprep.subr.bf16.mxu0 0
      %600 = vmatpush1.bf16.msra.mxu0 0
      %601 = vmatprep.subr.bf16.mxu0 0
      %602 = vmatpush1.bf16.msra.mxu0 0
      %603 = vmatprep.subr.bf16.mxu0 0
      %604 = vmatpush1.bf16.msra.mxu0 0
      %605 = vmatprep.subr.bf16.mxu0 0
      %606 = vmatpush1.bf16.msra.mxu0 0
      %607 = vmatprep.subr.bf16.mxu0 0
      %608 = vmatpush1.bf16.msra.mxu0 0
      %609 = vmatprep.subr.bf16.mxu0 0
      %610 = vmatpush1.bf16.msra.mxu0 0
      %611 = vmatprep.subr.bf16.mxu0 0
      %612 = vmatpush1.bf16.msra.mxu0 0
      %613 = vmatprep.subr.bf16.mxu0 0
      %614 = vmatpush1.bf16.msra.mxu0 0
      %615 = vmatprep.subr.bf16.mxu0 0
      %616 = vmatpush1.bf16.msra.mxu0 0
      %617 = vmatprep.subr.bf16.mxu0 0
      %618 = vmatpush1.bf16.msra.mxu0 0
      %619 = vmatprep.mubr.bf16.mxu0 0
      %620 = vmatmul.mubr.bf16.gmra.mrb[0].mxu0 %v582
      %v621 = vpop.f32.mrb[0].mxu0
      %v622 = vadd.f32 0.0, %v621
      %v623 = vpop.f32.mrb[0].mxu0
      %v624 = vpop.f32.mrb[0].mxu0
      %v625 = vpop.f32.mrb[0].mxu0
      %626 = vdwg.mxu0
      %627 = vrot.lane.b32.xlu0 %v396, 104
      %v628 = vpop.permute.xlu0 %627
      %629 = vrot.lane.b32.xlu0 %v401, 104
      %v630 = vpop.permute.xlu0 %629
      %v632 = vsel %vm286, %v628, 0
      %v635 = vsel %vm286, %v630, 0
      %637 = vmatprep.subr.bf16.mxu0 0
      %638 = vmatpush1.bf16.xpose.msra.mxu0 %v635
      %639 = vmatprep.subr.bf16.mxu0 0
      %640 = vmatpush1.bf16.xpose.msra.mxu0 0
      %641 = vmatprep.subr.bf16.mxu0 0
      %642 = vmatpush1.bf16.xpose.msra.mxu0 0
      %643 = vmatprep.subr.bf16.mxu0 0
      %644 = vmatpush1.bf16.xpose.msra.mxu0 0
      %645 = vmatprep.subr.bf16.mxu0 0
      %646 = vmatpush1.bf16.xpose.msra.mxu0 0
      %647 = vmatprep.subr.bf16.mxu0 0
      %648 = vmatpush1.bf16.xpose.msra.mxu0 0
      %649 = vmatprep.subr.bf16.mxu0 0
      %650 = vmatpush1.bf16.xpose.msra.mxu0 0
      %651 = vmatprep.subr.bf16.mxu0 0
      %652 = vmatpush1.bf16.xpose.msra.mxu0 0
      %653 = vmatprep.subr.bf16.mxu0 0
      %654 = vmatpush1.bf16.xpose.msra.mxu0 0
      %655 = vmatprep.subr.bf16.mxu0 0
      %656 = vmatpush1.bf16.xpose.msra.mxu0 0
      %657 = vmatprep.subr.bf16.mxu0 0
      %658 = vmatpush1.bf16.xpose.msra.mxu0 0
      %659 = vmatprep.subr.bf16.mxu0 0
      %660 = vmatpush1.bf16.xpose.msra.mxu0 0
      %661 = vmatprep.subr.bf16.mxu0 0
      %662 = vmatpush1.bf16.xpose.msra.mxu0 0
      %663 = vmatprep.subr.bf16.mxu0 0
      %664 = vmatpush1.bf16.xpose.msra.mxu0 0
      %665 = vmatprep.subr.bf16.mxu0 0
      %666 = vmatpush1.bf16.xpose.msra.mxu0 0
      %667 = vmatprep.subr.bf16.mxu0 0
      %668 = vmatpush1.bf16.xpose.msra.mxu0 0
      %669 = vmatprep.mubr.bf16.mxu0 0
      %670 = vmatmul.mubr.bf16.gmra.mrb[0].mxu0 %v632
      %v671 = vpop.f32.mrb[0].mxu0
      %v672 = vadd.f32 0.0, %v671
      %v673 = vpop.f32.mrb[0].mxu0
      %v674 = vpop.f32.mrb[0].mxu0
      %v675 = vpop.f32.mrb[0].mxu0
      %676 = vdwg.mxu0
      %v677 = vmul.f32 %v672, 0.35355338
      %v678 = vadd.f32 %v677, %v285
      %v679 = vsel %vm286, %v678, -inf
      %680 = vmax.xlane.f32.xlu0 %v679
      %v681 = vpop.xlane.xlu0 %680
      %v682 = vsub.f32 %v678, %v681
      %v683 = vmul.f32 %v682, 1.442695
      %v684 = vpow.pop %v683
      %v685 = vsel %vm286, %v684, 0.0
      %686 = vadd.xlane.f32.xlu0 %v685
      %v687 = vpop.xlane.xlu0 %686
      %v688 = vrcp.pop %v687
      %v689 = vmul.f32 %v684, %v688
      %v690 = vpack.c.bf16 %v689, %v689
      %691 = vrot.lane.b32.xlu0 %v466, 104
      %v692 = vpop.permute.xlu0 %691
      %v694 = vsel %vm286, %v690, 0
      %v697 = vsel %vm350, %v692, 0
      %699 = vmatprep.subr.bf16.mxu0 0
      %700 = vmatpush1.bf16.msra.mxu0 %v697
      %701 = vmatprep.subr.bf16.mxu0 0
      %702 = vmatpush1.bf16.msra.mxu0 0
      %703 = vmatprep.subr.bf16.mxu0 0
      %704 = vmatpush1.bf16.msra.mxu0 0
      %705 = vmatprep.subr.bf16.mxu0 0
      %706 = vmatpush1.bf16.msra.mxu0 0
      %707 = vmatprep.subr.bf16.mxu0 0
      %708 = vmatpush1.bf16.msra.mxu0 0
      %709 = vmatprep.subr.bf16.mxu0 0
      %710 = vmatpush1.bf16.msra.mxu0 0
      %711 = vmatprep.subr.bf16.mxu0 0
      %712 = vmatpush1.bf16.msra.mxu0 0
      %713 = vmatprep.subr.bf16.mxu0 0
      %714 = vmatpush1.bf16.msra.mxu0 0
      %715 = vmatprep.subr.bf16.mxu0 0
      %716 = vmatpush1.bf16.msra.mxu0 0
      %717 = vmatprep.subr.bf16.mxu0 0
      %718 = vmatpush1.bf16.msra.mxu0 0
      %719 = vmatprep.subr.bf16.mxu0 0
      %720 = vmatpush1.bf16.msra.mxu0 0
      %721 = vmatprep.subr.bf16.mxu0 0
      %722 = vmatpush1.bf16.msra.mxu0 0
      %723 = vmatprep.subr.bf16.mxu0 0
      %724 = vmatpush1.bf16.msra.mxu0 0
      %725 = vmatprep.subr.bf16.mxu0 0
      %726 = vmatpush1.bf16.msra.mxu0 0
      %727 = vmatprep.subr.bf16.mxu0 0
      %728 = vmatpush1.bf16.msra.mxu0 0
      %729 = vmatprep.subr.bf16.mxu0 0
      %730 = vmatpush1.bf16.msra.mxu0 0
      %731 = vmatprep.mubr.bf16.mxu0 0
      %732 = vmatmul.mubr.bf16.gmra.mrb[0].mxu0 %v694
      %v733 = vpop.f32.mrb[0].mxu0
      %v734 = vadd.f32 0.0, %v733
      %v735 = vpop.f32.mrb[0].mxu0
      %v736 = vpop.f32.mrb[0].mxu0
      %v737 = vpop.f32.mrb[0].mxu0
      %738 = vdwg.mxu0
      %740 = vrot.lane.b32.xlu0 %v510, 8
      %v741 = vpop.permute.xlu0 %740
      %744 = vrot.lane.b32.xlu0 %v622, 16
      %v745 = vpop.permute.xlu0 %744
      %748 = vrot.lane.b32.xlu0 %v734, 24
      %v749 = vpop.permute.xlu0 %748
      %v751 = vsel %vm286, %v389, %v741
      %vm752 = vcmask 130048
      %v753 = vsel %vm752, %v751, %v745
      %vm754 = vcmask 195584
      %v755 = vsel %vm754, %v753, %v749
      %v756 = vpack.c.bf16 %v755, %v755
      %v757 = vld [vmem:[%s4] sm:$0xf]
      %v758 = vld [vmem:[%s4 + $0x4] sm:$0xf]
      %v759 = vld [vmem:[%s4 + $0x8] sm:$0xf]
      %v760 = vld [vmem:[%s4 + $0xc] sm:$0xf]
      %v761 = vld [vmem:[%s5] sm:$0x1]
      %v763 = vlaneseq
      %v764 = vshrl.u32 %v763, 7
      %v765 = vsub.s32 0, %v764
      %v766 = vrot.slane %v761, %v765
      %v772 = vunpack.c.l.b16 %v757
      %v773 = vunpack.c.l.b16 %v758
      %v774 = vunpack.c.l.b16 %v759
      %v775 = vunpack.c.l.b16 %v760
      %v776 = vpack.c.b16 %v773, %v772
      %v777 = vpack.c.b16 %v775, %v774
      %vm780 = vcmask 261120
      %v782 = vsel %vm780, %v756, 0
      %784 = vmatprep.subr.bf16.mxu0 0
      %785 = vmatpush1.bf16.msra.mxu0 %v776
      %786 = vmatprep.subr.bf16.mxu0 0
      %787 = vmatpush1.bf16.msra.mxu0 %v777
      %788 = vmatprep.subr.bf16.mxu0 0
      %789 = vmatpush1.bf16.msra.mxu0 0
      %790 = vmatprep.subr.bf16.mxu0 0
      %791 = vmatpush1.bf16.msra.mxu0 0
      %792 = vmatprep.subr.bf16.mxu0 0
      %793 = vmatpush1.bf16.msra.mxu0 0
      %794 = vmatprep.subr.bf16.mxu0 0
      %795 = vmatpush1.bf16.msra.mxu0 0
      %796 = vmatprep.subr.bf16.mxu0 0
      %797 = vmatpush1.bf16.msra.mxu0 0
      %798 = vmatprep.subr.bf16.mxu0 0
      %799 = vmatpush1.bf16.msra.mxu0 0
      %800 = vmatprep.subr.bf16.mxu0 0
      %801 = vmatpush1.bf16.msra.mxu0 0
      %802 = vmatprep.subr.bf16.mxu0 0
      %803 = vmatpush1.bf16.msra.mxu0 0
      %804 = vmatprep.subr.bf16.mxu0 0
      %805 = vmatpush1.bf16.msra.mxu0 0
      %806 = vmatprep.subr.bf16.mxu0 0
      %807 = vmatpush1.bf16.msra.mxu0 0
      %808 = vmatprep.subr.bf16.mxu0 0
      %809 = vmatpush1.bf16.msra.mxu0 0
      %810 = vmatprep.subr.bf16.mxu0 0
      %811 = vmatpush1.bf16.msra.mxu0 0
      %812 = vmatprep.subr.bf16.mxu0 0
      %813 = vmatpush1.bf16.msra.mxu0 0
      %814 = vmatprep.subr.bf16.mxu0 0
      %815 = vmatpush1.bf16.msra.mxu0 0
      %816 = vmatprep.mubr.bf16.mxu0 0
      %817 = vmatmul.mubr.bf16.gmra.mrb[0].mxu0 %v782
      %v818 = vpop.f32.mrb[0].mxu0
      %v819 = vadd.f32 %v766, %v818
      %v820 = vpop.f32.mrb[0].mxu0
      %v821 = vpop.f32.mrb[0].mxu0
      %v822 = vpop.f32.mrb[0].mxu0
      %823 = vdwg.mxu0
      %v824 = vpack.c.bf16 %v819, %v819
      %vm825 = vcmask 257024
      %826 = vst.msk [vmem:[%s280] sm:$0xf] %vm825, %v824
      %p827 = scmp.lt.s32.totalorder %s17, 1
      %s828 = scalar_select %p827, %s17, 1
      %s829 = smul.addr %s828, 4
      %s830 = scalar_lea.vmem %s6, %s829
      // Predicated region
      $region45: #{decoder_forward.19} parent=43 // pred_check
        %p831 = pneg %p176
      $region46: #{decoder_forward.19} parent=43 // pred_check_branch
        %833 = sbr.rel (%p831) target = $region48
      $region47: #{decoder_forward.19} parent=43 // pred_region
        _
      $region48: #{decoder_forward.19} parent=43 // pred_fallthru
        _
    $region44: #{decoder_forward.19} parent=5 // pred_fallthru
      _
    %p834 = scmp.le.s32.totalorder 2, %s12
    // Predicated region
    $region49: #{decoder_forward.19} parent=5 // pred_check
      %p835 = pneg %p834
    $region50: #{decoder_forward.19} parent=5 // pred_check_branch
      %837 = sbr.rel (%p835) target = $region52
    $region51: #{decoder_forward.19} parent=5 // pred_region
      %s838 = ssub.s32 %s12, 2
      // Predicated region
      $region53: #{decoder_forward.19} parent=51 // pred_check
        %p839 = pneg %p182
      $region54: #{decoder_forward.19} parent=51 // pred_check_branch
        %841 = sbr.rel (%p839) target = $region56
      $region55: #{decoder_forward.19} parent=51 // pred_region
        %p842 = scmp.lt.s32.totalorder %s18, 1
        %s843 = scalar_select %p842, %s18, 1
        %s844 = smul.addr %s843, 4
        %s845 = scalar_lea.vmem %s6, %s844
      $region56: #{decoder_forward.19} parent=51 // pred_fallthru
        _
    $region52: #{decoder_forward.19} parent=5 // pred_fallthru
      _
  $region6: #{decoder_forward.19} parent=0 // loop_footer
    %s16 = sadd.s32 1, %s12
  $region7: #{decoder_forward.19} parent=0 // loop_footer_branch
    %11 = sbr.rel target = $region3
  $region8: #{decoder_forward.19} parent=0 // loop_exit
    _

// kernel: decoder_forward.22
$region0: #{decoder_forward.22}
  #allocation0 [shape = 'u32[]', space=smem, size = 0x4, offset = 0x4, fixed_abs, tag = 'smem constant byte address 0x4 - core index']
  #allocation1 [shape = 'u32[144,128]{1,0:T(1,128)}', space=vmem, size = 0x12000, scoped, tag = 'internal scratch']
  #allocation2 [shape = 'f32[16,64]{1,0:T(8,128)}', space=vmem, size = 0x2000, scoped, tag = 'scratch operand']
  %s0 = inlined_call_operand.vmem [shape: bf16[16,32], index: 0, kind: input, shape index: {}]
  %s1 = inlined_call_operand.vmem [shape: bf16[32,64], index: 1, kind: input, shape index: {}]
  %s2 = inlined_call_operand.vmem [shape: f32[1,64], index: 2, kind: input, shape index: {}]
  %s3 = inlined_call_operand.vmem [shape: bf16[16,64], index: 3, kind: output, shape index: {}]
  %s4 = sld [smem:[#allocation0]]
  $region30: #{decoder_forward.22} parent=0
    _
  %s6 = ssub.s32 1, %s4
  %s7 = scalar_select 0, %s6, %s4
  // Predicated region
  $region2: #{decoder_forward.22} parent=0 // pred_check
    _
  $region3: #{decoder_forward.22} parent=0 // pred_check_branch
    %9 = sbr.rel (0) target = $region5
  $region4: #{decoder_forward.22} parent=0 // pred_region
    _
  $region5: #{decoder_forward.22} parent=0 // pred_fallthru
    _
  // Predicated region
  $region6: #{decoder_forward.22} parent=0 // pred_check
    _
  $region7: #{decoder_forward.22} parent=0 // pred_check_branch
    %11 = sbr.rel (0) target = $region9
  $region8: #{decoder_forward.22} parent=0 // pred_region
    _
  $region9: #{decoder_forward.22} parent=0 // pred_fallthru
    _
  // Predicated region
  $region10: #{decoder_forward.22} parent=0 // pred_check
    _
  $region11: #{decoder_forward.22} parent=0 // pred_check_branch
    %13 = sbr.rel (0) target = $region13
  $region12: #{decoder_forward.22} parent=0 // pred_region
    _
  $region13: #{decoder_forward.22} parent=0 // pred_fallthru
    _
  %p15 = scmp.eq.s32.totalorder 0, 0
  // Predicated region
  $region14: #{decoder_forward.22} parent=0 // pred_check
    %p16 = pneg %p15
  $region15: #{decoder_forward.22} parent=0 // pred_check_branch
    %18 = sbr.rel (%p16) target = $region17
  $region16: #{decoder_forward.22} parent=0 // pred_region
    %vm19 = vcmask 523264
    %20 = vst.msk [vmem:[#allocation2] sm:$0xff] %vm19, 0.0
    %21 = vst.msk [vmem:[#allocation2 + $0x8] sm:$0xff] %vm19, 0.0
  $region17: #{decoder_forward.22} parent=0 // pred_fallthru
    _
  %v22 = vld [vmem:[#allocation2] sm:$0xff]
  %v23 = vld [vmem:[#allocation2 + $0x8] sm:$0xff]
  %v24 = vld [vmem:[%s0] sm:$0xf]
  %v25 = vld [vmem:[%s0 + $0x4] sm:$0xf]
  %v26 = vld [vmem:[%s1] sm:$0xf]
  %v27 = vld [vmem:[%s1 + $0x4] sm:$0xf]
  %v28 = vld [vmem:[%s1 + $0x8] sm:$0xf]
  %v29 = vld [vmem:[%s1 + $0xc] sm:$0xf]
  %v32 = vunpack.c.l.b16 %v24
  %v33 = vunpack.c.l.b16 %v25
  %v34 = vpack.c.b16 %v33, %v32
  %v39 = vunpack.c.l.b16 %v26
  %v40 = vunpack.c.l.b16 %v27
  %v41 = vunpack.c.l.b16 %v28
  %v42 = vunpack.c.l.b16 %v29
  %v43 = vpack.c.b16 %v40, %v39
  %v44 = vpack.c.b16 %v42, %v41
  %vm47 = vcmask 261120
  %v49 = vsel %vm47, %v34, 0
  %51 = vmatprep.subr.bf16.mxu0 0
  %52 = vmatpush1.bf16.msra.mxu0 %v43
  %53 = vmatprep.subr.bf16.mxu0 0
  %54 = vmatpush1.bf16.msra.mxu0 %v44
  %55 = vmatprep.subr.bf16.mxu0 0
  %56 = vmatpush1.bf16.msra.mxu0 0
  %57 = vmatprep.subr.bf16.mxu0 0
  %58 = vmatpush1.bf16.msra.mxu0 0
  %59 = vmatprep.subr.bf16.mxu0 0
  %60 = vmatpush1.bf16.msra.mxu0 0
  %61 = vmatprep.subr.bf16.mxu0 0
  %62 = vmatpush1.bf16.msra.mxu0 0
  %63 = vmatprep.subr.bf16.mxu0 0
  %64 = vmatpush1.bf16.msra.mxu0 0
  %65 = vmatprep.subr.bf16.mxu0 0
  %66 = vmatpush1.bf16.msra.mxu0 0
  %67 = vmatprep.subr.bf16.mxu0 0
  %68 = vmatpush1.bf16.msra.mxu0 0
  %69 = vmatprep.subr.bf16.mxu0 0
  %70 = vmatpush1.bf16.msra.mxu0 0
  %71 = vmatprep.subr.bf16.mxu0 0
  %72 = vmatpush1.bf16.msra.mxu0 0
  %73 = vmatprep.subr.bf16.mxu0 0
  %74 = vmatpush1.bf16.msra.mxu0 0
  %75 = vmatprep.subr.bf16.mxu0 0
  %76 = vmatpush1.bf16.msra.mxu0 0
  %77 = vmatprep.subr.bf16.mxu0 0
  %78 = vmatpush1.bf16.msra.mxu0 0
  %79 = vmatprep.subr.bf16.mxu0 0
  %80 = vmatpush1.bf16.msra.mxu0 0
  %81 = vmatprep.subr.bf16.mxu0 0
  %82 = vmatpush1.bf16.msra.mxu0 0
  %83 = vmatprep.mubr.bf16.mxu0 0
  %84 = vmatmul.mubr.bf16.gmra.mrb[0].mxu0 %v49
  %v85 = vpop.f32.mrb[0].mxu0
  %v86 = vadd.f32 0.0, %v85
  %v87 = vpop.f32.mrb[0].mxu0
  %v88 = vpop.f32.mrb[0].mxu0
  %v89 = vadd.f32 0.0, %v88
  %v90 = vpop.f32.mrb[0].mxu0
  %91 = vdwg.mxu0
  %v92 = vadd.f32 %v22, %v86
  %v93 = vadd.f32 %v23, %v89
  %vm94 = vcmask 523264
  %95 = vst.msk [vmem:[#allocation2] sm:$0xff] %vm94, %v92
  %96 = vst.msk [vmem:[#allocation2 + $0x8] sm:$0xff] %vm94, %v93
  // Predicated region
  $region18: #{decoder_forward.22} parent=0 // pred_check
    %p97 = pneg %p15
  $region19: #{decoder_forward.22} parent=0 // pred_check_branch
    %99 = sbr.rel (%p97) target = $region21
  $region20: #{decoder_forward.22} parent=0 // pred_region
    %v100 = vld [vmem:[#allocation2] sm:$0xff]
    %v101 = vld [vmem:[#allocation2 + $0x8] sm:$0xff]
    %v102 = vld [vmem:[%s2] sm:$0x1]
    %v104 = vlaneseq
    %v105 = vshrl.u32 %v104, 7
    %v106 = vsub.s32 0, %v105
    %v107 = vrot.slane %v102, %v106
    %v109 = vadd.f32 %v100, %v107
    %v110 = vadd.f32 %v101, %v107
    %v111 = vpack.c.bf16 %v110, %v109
    %v113 = vunpack.c.l.b16 %v111
    %v114 = vunpack.c.h.b16 %v111
    %v115 = vpack.c.b16 %v113, %v113
    %v116 = vpack.c.b16 %v114, %v114
    %vm119 = vcmask 519168
    %120 = vst.msk [vmem:[%s3] sm:$0xf] %vm119, %v115
    %121 = vst.msk [vmem:[%s3 + $0x4] sm:$0xf] %vm119, %v116
  $region21: #{decoder_forward.22} parent=0 // pred_fallthru
    _
  // Predicated region
  $region22: #{decoder_forward.22} parent=0 // pred_check
    _
  $region23: #{decoder_forward.22} parent=0 // pred_check_branch
    %123 = sbr.rel (0) target = $region25
  $region24: #{decoder_forward.22} parent=0 // pred_region
    _
  $region25: #{decoder_forward.22} parent=0 // pred_fallthru
    _
  // Predicated region
  $region26: #{decoder_forward.22} parent=0 // pred_check
    _
  $region27: #{decoder_forward.22} parent=0 // pred_check_branch
    %125 = sbr.rel (0) target = $region29
  $region28: #{decoder_forward.22} parent=0 // pred_region
    _
  $region29: #{decoder_forward.22} parent=0 // pred_fallthru
    _

// kernel: decoder_forward.25
$region0: #{decoder_forward.25}
  #allocation0 [shape = 'u32[]', space=smem, size = 0x4, offset = 0x4, fixed_abs, tag = 'smem constant byte address 0x4 - core index']
  #allocation1 [shape = 'u32[144,128]{1,0:T(1,128)}', space=vmem, size = 0x12000, scoped, tag = 'internal scratch']
  %s0 = inlined_call_operand.vmem [shape: bf16[16,32], index: 0, kind: input, shape index: {}]
  %s1 = inlined_call_operand.vmem [shape: bf16[32,64], index: 1, kind: input, shape index: {}]
  %s2 = inlined_call_operand.vmem [shape: f32[1,64], index: 2, kind: input, shape index: {}]
  %s3 = inlined_call_operand.vmem [shape: bf16[64,32], index: 3, kind: input, shape index: {}]
  %s4 = inlined_call_operand.vmem [shape: f32[1,32], index: 4, kind: input, shape index: {}]
  %s5 = inlined_call_operand.vmem [shape: bf16[16,32], index: 5, kind: output, shape index: {}]
  %s6 = sld [smem:[#allocation0]]
  $region30: #{decoder_forward.25} parent=0
    _
  %s8 = ssub.s32 1, %s6
  %s9 = scalar_select 0, %s8, %s6
  // Predicated region
  $region2: #{decoder_forward.25} parent=0 // pred_check
    _
  $region3: #{decoder_forward.25} parent=0 // pred_check_branch
    %11 = sbr.rel (0) target = $region5
  $region4: #{decoder_forward.25} parent=0 // pred_region
    _
  $region5: #{decoder_forward.25} parent=0 // pred_fallthru
    _
  // Predicated region
  $region6: #{decoder_forward.25} parent=0 // pred_check
    _
  $region7: #{decoder_forward.25} parent=0 // pred_check_branch
    %13 = sbr.rel (0) target = $region9
  $region8: #{decoder_forward.25} parent=0 // pred_region
    _
  $region9: #{decoder_forward.25} parent=0 // pred_fallthru
    _
  // Predicated region
  $region10: #{decoder_forward.25} parent=0 // pred_check
    _
  $region11: #{decoder_forward.25} parent=0 // pred_check_branch
    %15 = sbr.rel (0) target = $region13
  $region12: #{decoder_forward.25} parent=0 // pred_region
    _
  $region13: #{decoder_forward.25} parent=0 // pred_fallthru
    _
  // Predicated region
  $region14: #{decoder_forward.25} parent=0 // pred_check
    _
  $region15: #{decoder_forward.25} parent=0 // pred_check_branch
    %17 = sbr.rel (0) target = $region17
  $region16: #{decoder_forward.25} parent=0 // pred_region
    _
  $region17: #{decoder_forward.25} parent=0 // pred_fallthru
    _
  // Predicated region
  $region18: #{decoder_forward.25} parent=0 // pred_check
    _
  $region19: #{decoder_forward.25} parent=0 // pred_check_branch
    %19 = sbr.rel (0) target = $region21
  $region20: #{decoder_forward.25} parent=0 // pred_region
    _
  $region21: #{decoder_forward.25} parent=0 // pred_fallthru
    _
  %v21 = vld [vmem:[%s0] sm:$0xf]
  %v22 = vld [vmem:[%s0 + $0x4] sm:$0xf]
  %v23 = vld [vmem:[%s1] sm:$0xf]
  %v24 = vld [vmem:[%s1 + $0x4] sm:$0xf]
  %v25 = vld [vmem:[%s1 + $0x8] sm:$0xf]
  %v26 = vld [vmem:[%s1 + $0xc] sm:$0xf]
  %v27 = vld [vmem:[%s2] sm:$0x1]
  %v29 = vlaneseq
  %v30 = vshrl.u32 %v29, 7
  %v31 = vsub.s32 0, %v30
  %v32 = vrot.slane %v27, %v31
  %v36 = vunpack.c.l.b16 %v21
  %v37 = vunpack.c.l.b16 %v22
  %v38 = vpack.c.b16 %v37, %v36
  %v43 = vunpack.c.l.b16 %v23
  %v44 = vunpack.c.l.b16 %v24
  %v45 = vunpack.c.l.b16 %v25
  %v46 = vunpack.c.l.b16 %v26
  %v47 = vpack.c.b16 %v44, %v43
  %v48 = vpack.c.b16 %v46, %v45
  %vm51 = vcmask 261120
  %v53 = vsel %vm51, %v38, 0
  %55 = vmatprep.subr.bf16.mxu0 0
  %56 = vmatpush1.bf16.msra.mxu0 %v47
  %57 = vmatprep.subr.bf16.mxu0 0
  %58 = vmatpush1.bf16.msra.mxu0 %v48
  %59 = vmatprep.subr.bf16.mxu0 0
  %60 = vmatpush1.bf16.msra.mxu0 0
  %61 = vmatprep.subr.bf16.mxu0 0
  %62 = vmatpush1.bf16.msra.mxu0 0
  %63 = vmatprep.subr.bf16.mxu0 0
  %64 = vmatpush1.bf16.msra.mxu0 0
  %65 = vmatprep.subr.bf16.mxu0 0
  %66 = vmatpush1.bf16.msra.mxu0 0
  %67 = vmatprep.subr.bf16.mxu0 0
  %68 = vmatpush1.bf16.msra.mxu0 0
  %69 = vmatprep.subr.bf16.mxu0 0
  %70 = vmatpush1.bf16.msra.mxu0 0
  %71 = vmatprep.subr.bf16.mxu0 0
  %72 = vmatpush1.bf16.msra.mxu0 0
  %73 = vmatprep.subr.bf16.mxu0 0
  %74 = vmatpush1.bf16.msra.mxu0 0
  %75 = vmatprep.subr.bf16.mxu0 0
  %76 = vmatpush1.bf16.msra.mxu0 0
  %77 = vmatprep.subr.bf16.mxu0 0
  %78 = vmatpush1.bf16.msra.mxu0 0
  %79 = vmatprep.subr.bf16.mxu0 0
  %80 = vmatpush1.bf16.msra.mxu0 0
  %81 = vmatprep.subr.bf16.mxu0 0
  %82 = vmatpush1.bf16.msra.mxu0 0
  %83 = vmatprep.subr.bf16.mxu0 0
  %84 = vmatpush1.bf16.msra.mxu0 0
  %85 = vmatprep.subr.bf16.mxu0 0
  %86 = vmatpush1.bf16.msra.mxu0 0
  %87 = vmatprep.mubr.bf16.mxu0 0
  %88 = vmatmul.mubr.bf16.gmra.mrb[0].mxu0 %v53
  %v89 = vpop.f32.mrb[0].mxu0
  %v90 = vadd.f32 %v32, %v89
  %v91 = vpop.f32.mrb[0].mxu0
  %v92 = vpop.f32.mrb[0].mxu0
  %v93 = vadd.f32 %v32, %v92
  %v94 = vpop.f32.mrb[0].mxu0
  %95 = vdwg.mxu0
  %v96 = vmax.f32 %v90, 0.0
  %v97 = vmax.f32 %v93, 0.0
  %v98 = vpack.c.bf16 %v97, %v96
  %v99 = vld [vmem:[%s3] sm:$0xf]
  %v100 = vld [vmem:[%s3 + $0x4] sm:$0xf]
  %v101 = vld [vmem:[%s3 + $0x8] sm:$0xf]
  %v102 = vld [vmem:[%s3 + $0xc] sm:$0xf]
  %v103 = vld [vmem:[%s3 + $0x10] sm:$0xf]
  %v104 = vld [vmem:[%s3 + $0x14] sm:$0xf]
  %v105 = vld [vmem:[%s3 + $0x18] sm:$0xf]
  %v106 = vld [vmem:[%s3 + $0x1c] sm:$0xf]
  %v107 = vld [vmem:[%s4] sm:$0x1]
  %v109 = vlaneseq
  %v110 = vshrl.u32 %v109, 7
  %v111 = vsub.s32 0, %v110
  %v112 = vrot.slane %v107, %v111
  %v122 = vunpack.c.l.b16 %v99
  %v123 = vunpack.c.l.b16 %v100
  %v124 = vunpack.c.l.b16 %v101
  %v125 = vunpack.c.l.b16 %v102
  %v126 = vunpack.c.l.b16 %v103
  %v127 = vunpack.c.l.b16 %v104
  %v128 = vunpack.c.l.b16 %v105
  %v129 = vunpack.c.l.b16 %v106
  %v130 = vpack.c.b16 %v123, %v122
  %v131 = vpack.c.b16 %v125, %v124
  %v132 = vpack.c.b16 %v127, %v126
  %v133 = vpack.c.b16 %v129, %v128
  %vm138 = vcmask 523264
  %v140 = vsel %vm138, %v98, 0
  %142 = vmatprep.subr.bf16.mxu0 0
  %143 = vmatpush1.bf16.msra.mxu0 %v130
  %144 = vmatprep.subr.bf16.mxu0 0
  %145 = vmatpush1.bf16.msra.mxu0 %v131
  %146 = vmatprep.subr.bf16.mxu0 0
  %147 = vmatpush1.bf16.msra.mxu0 %v132
  %148 = vmatprep.subr.bf16.mxu0 0
  %149 = vmatpush1.bf16.msra.mxu0 %v133
  %150 = vmatprep.subr.bf16.mxu0 0
  %151 = vmatpush1.bf16.msra.mxu0 0
  %152 = vmatprep.subr.bf16.mxu0 0
  %153 = vmatpush1.bf16.msra.mxu0 0
  %154 = vmatprep.subr.bf16.mxu0 0
  %155 = vmatpush1.bf16.msra.mxu0 0
  %156 = vmatprep.subr.bf16.mxu0 0
  %157 = vmatpush1.bf16.msra.mxu0 0
  %158 = vmatprep.subr.bf16.mxu0 0
  %159 = vmatpush1.bf16.msra.mxu0 0
  %160 = vmatprep.subr.bf16.mxu0 0
  %161 = vmatpush1.bf16.msra.mxu0 0
  %162 = vmatprep.subr.bf16.mxu0 0
  %163 = vmatpush1.bf16.msra.mxu0 0
  %164 = vmatprep.subr.bf16.mxu0 0
  %165 = vmatpush1.bf16.msra.mxu0 0
  %166 = vmatprep.subr.bf16.mxu0 0
  %167 = vmatpush1.bf16.msra.mxu0 0
  %168 = vmatprep.subr.bf16.mxu0 0
  %169 = vmatpush1.bf16.msra.mxu0 0
  %170 = vmatprep.subr.bf16.mxu0 0
  %171 = vmatpush1.bf16.msra.mxu0 0
  %172 = vmatprep.subr.bf16.mxu0 0
  %173 = vmatpush1.bf16.msra.mxu0 0
  %174 = vmatprep.mubr.bf16.mxu0 0
  %175 = vmatmul.mubr.bf16.gmra.mrb[0].mxu0 %v140
  %v176 = vpop.f32.mrb[0].mxu0
  %v177 = vadd.f32 %v112, %v176
  %v178 = vpop.f32.mrb[0].mxu0
  %v179 = vpop.f32.mrb[0].mxu0
  %v180 = vadd.f32 %v112, %v179
  %v181 = vpop.f32.mrb[0].mxu0
  %182 = vdwg.mxu0
  %v183 = vpack.c.bf16 %v180, %v177
  %v185 = vunpack.c.l.b16 %v183
  %v186 = vunpack.c.h.b16 %v183
  %v187 = vpack.c.b16 %v185, %v185
  %v188 = vpack.c.b16 %v186, %v186
  %vm191 = vcmask 257024
  %192 = vst.msk [vmem:[%s5] sm:$0xf] %vm191, %v187
  %193 = vst.msk [vmem:[%s5 + $0x4] sm:$0xf] %vm191, %v188
  // Predicated region
  $region22: #{decoder_forward.25} parent=0 // pred_check
    _
  $region23: #{decoder_forward.25} parent=0 // pred_check_branch
    %195 = sbr.rel (0) target = $region25
  $region24: #{decoder_forward.25} parent=0 // pred_region
    _
  $region25: #{decoder_forward.25} parent=0 // pred_fallthru
    _
  // Predicated region
  $region26: #{decoder_forward.25} parent=0 // pred_check
    _
  $region27: #{decoder_forward.25} parent=0 // pred_check_branch
    %197 = sbr.rel (0) target = $region29
  $region28: #{decoder_forward.25} parent=0 // pred_region
    _
  $region29: #{decoder_forward.25} parent=0 // pred_fallthru
    _

</llo_original>
